<compile_context>
chip_gen: v7x
topology: tpu7x:2x2x1
jax: 0.10.0
libtpu: 0.0.40
codegen_flags: <defaults>
</compile_context>

<pallas_src>
import jax
import jax.numpy as jnp
from jax import lax
from jax.experimental import pallas as pl
from jax.experimental.pallas import tpu as pltpu


def _make_flash_self_attention_kernel(cache_kv: bool):
    """Build the kernel body.  Grid: (batch, q-tile, kv-tile); kv is the reduction axis.

    When `cache_kv` is True, two trailing VMEM scratch refs hold the projected
    K / V for the whole sequence of the current batch; they are filled only on
    the first q-tile pass (qi == 0) and reused by all later q-tiles.
    """

    def kernel(xq_ref, xkv_ref,
               wq_ref, bq_ref, wk_ref, bk_ref, wv_ref, bv_ref, wo_ref, bo_ref,
               o_ref,
               q_scr, m_scr, l_scr, acc_scr, *kv_cache):
        qi = pl.program_id(1)
        ki = pl.program_id(2)
        tk = xkv_ref.shape[0]

        @pl.when(ki == 0)
        def _init():
            # Project the Q tile once per (batch, q-tile); fold 1/sqrt(d_model) in.
            q = jnp.dot(xq_ref[...], wq_ref[...],
                        preferred_element_type=jnp.float32) + bq_ref[...]
            q_scr[...] = q * (1.0 / jnp.sqrt(jnp.float32(q.shape[-1])))
            m_scr[...] = jnp.full_like(m_scr, -jnp.inf)
            l_scr[...] = jnp.zeros_like(l_scr)
            acc_scr[...] = jnp.zeros_like(acc_scr)

        def project_kv():
            xkv = xkv_ref[...]                                        # (tk, D)
            k = jnp.dot(xkv, wk_ref[...],
                        preferred_element_type=jnp.float32) + bk_ref[...]
            v = jnp.dot(xkv, wv_ref[...],
                        preferred_element_type=jnp.float32) + bv_ref[...]
            return k, v

        if cache_kv:
            k_cache, v_cache = kv_cache
            off = pl.multiple_of(ki * tk, tk)

            @pl.when(qi == 0)
            def _fill_cache():
                k_new, v_new = project_kv()
                k_cache[pl.ds(off, tk), :] = k_new
                v_cache[pl.ds(off, tk), :] = v_new

            k = k_cache[pl.ds(off, tk), :]
            v = v_cache[pl.ds(off, tk), :]
        else:
            k, v = project_kv()

        # Scores: contract the D axes directly — no explicit K^T materialization.
        s = lax.dot_general(q_scr[...], k, (((1,), (1,)), ((), ())),
                            preferred_element_type=jnp.float32)       # (tq, tk)

        # Online (streaming) softmax update.
        m_prev = m_scr[...]
        m_new = jnp.maximum(m_prev, jnp.max(s, axis=-1, keepdims=True))
        alpha = jnp.exp(m_prev - m_new)
        p = jnp.exp(s - m_new)
        l_scr[...] = alpha * l_scr[...] + jnp.sum(p, axis=-1, keepdims=True)
        acc_scr[...] = alpha * acc_scr[...] + jnp.dot(
            p.astype(v.dtype), v, preferred_element_type=jnp.float32)
        m_scr[...] = m_new

        @pl.when(ki == pl.num_programs(2) - 1)
        def _finalize():
            inv_l = pl.reciprocal(l_scr[...], approx=True)   # EUP slot, frees VALU
            attn_out = acc_scr[...] * inv_l                  # (tq, D)
            out = jnp.dot(attn_out.astype(wo_ref.dtype), wo_ref[...],
                          preferred_element_type=jnp.float32) + bo_ref[...]
            o_ref[...] = out.astype(o_ref.dtype)

    return kernel


def self_attention(x, params, *, tq=128, tk=128,
                   kv_cache_budget_bytes=8 * 1024 * 1024):
    """x: (B, S, D). params: dict of pre-transposed weights/biases (see init_params)."""
    B, S, D = x.shape
    tq = min(tq, S)
    tk = min(tk, S)
    assert S % tq == 0 and S % tk == 0, "seq length must be divisible by tile sizes"

    wq, bq = params["wq"], params["bq"]
    wk, bk = params["wk"], params["bk"]
    wv, bv = params["wv"], params["bv"]
    wo, bo = params["wo"], params["bo"]

    # Cache projected K/V for the whole sequence if it fits the VMEM budget and
    # there is more than one q-tile (otherwise caching buys nothing).
    cache_kv = (2 * S * D * 4 <= kv_cache_budget_bytes) and (S // tq > 1)
    # TODO(synk): for very long sequences (cache_kv=False) K/V are re-projected
    # per q-tile; a two-pass variant (pre-project K/V to HBM) would avoid that.

    # x is passed twice: once sliced by q-tile, once sliced by kv-tile.
    xq_spec = pl.BlockSpec((pl.Squeezed(), tq, D), lambda b, qi, ki: (b, qi, 0))
    xkv_spec = pl.BlockSpec((pl.Squeezed(), tk, D), lambda b, qi, ki: (b, ki, 0))
    # Weights / biases never change across the grid -> single-buffered.
    w_spec = pl.BlockSpec((D, D), lambda b, qi, ki: (0, 0),
                          pipeline_mode=pl.Buffered(1))
    b_spec = pl.BlockSpec((1, D), lambda b, qi, ki: (0, 0),
                          pipeline_mode=pl.Buffered(1))
    out_spec = pl.BlockSpec((pl.Squeezed(), tq, D), lambda b, qi, ki: (b, qi, 0))

    scratch = [
        pltpu.VMEM((tq, D), jnp.float32),   # scaled Q tile cache
        pltpu.VMEM((tq, 1), jnp.float32),   # running max  m
        pltpu.VMEM((tq, 1), jnp.float32),   # running sum  l
        pltpu.VMEM((tq, D), jnp.float32),   # output accumulator
    ]
    if cache_kv:
        scratch += [pltpu.VMEM((S, D), jnp.float32),   # projected K (per batch)
                    pltpu.VMEM((S, D), jnp.float32)]   # projected V (per batch)

    # With the per-batch K/V cache, q-tile iterations are no longer independent.
    dim_sem = ("parallel", "arbitrary" if cache_kv else "parallel", "arbitrary")

    grid = (B, S // tq, S // tk)

    return pl.pallas_call(
        _make_flash_self_attention_kernel(cache_kv),
        out_shape=jax.ShapeDtypeStruct((B, S, D), x.dtype),
        grid_spec=pltpu.PrefetchScalarGridSpec(
            num_scalar_prefetch=0,
            grid=grid,
            in_specs=[xq_spec, xkv_spec,
                      w_spec, b_spec,   # query
                      w_spec, b_spec,   # key
                      w_spec, b_spec,   # value
                      w_spec, b_spec],  # fc_out
            out_specs=out_spec,
            scratch_shapes=scratch),
        compiler_params=pltpu.CompilerParams(
            dimension_semantics=dim_sem,
            vmem_limit_bytes=32 * 1024 * 1024),
    )(x, x, wq, bq, wk, bk, wv, bv, wo, bo)


def init_params(key, d_model):
    """Deterministic init mimicking nn.Linear (uniform(-1/sqrt(D), 1/sqrt(D))).
    Weights are stored as (D_in, D_out) — i.e. already transposed vs PyTorch."""
    bound = 1.0 / jnp.sqrt(jnp.float32(d_model))
    keys = jax.random.split(key, 8)

    def lin(kw, kb):
        w = jax.random.uniform(kw, (d_model, d_model), jnp.float32, -bound, bound)
        b = jax.random.uniform(kb, (1, d_model), jnp.float32, -bound, bound)
        return w, b

    wq, bq = lin(keys[0], keys[1])
    wk, bk = lin(keys[2], keys[3])
    wv, bv = lin(keys[4], keys[5])
    wo, bo = lin(keys[6], keys[7])
    return {"wq": wq, "bq": bq, "wk": wk, "bk": bk,
            "wv": wv, "bv": bv, "wo": wo, "bo": bo}


def self_attention_ref(x, params):
    """Pure-JAX reference matching the PyTorch forward."""
    D = x.shape[-1]
    q = x @ params["wq"] + params["bq"]
    k = x @ params["wk"] + params["bk"]
    v = x @ params["wv"] + params["bv"]
    energy = jnp.einsum("bsd,btd->bst", q, k) / jnp.sqrt(jnp.float32(D))
    attn = jax.nn.softmax(energy, axis=-1)
    out = jnp.einsum("bst,btd->bsd", attn, v)
    return out @ params["wo"] + params["bo"]


if __name__ == "__main__":
    key = jax.random.PRNGKey(0)
    k_x, k_p = jax.random.split(key)

    # Lane-dense small config: D = 128 (full lane width), S = 256 -> 2x2 q/kv tiles.
    B, S, D = 2, 256, 128
    x = jax.random.normal(k_x, (B, S, D), dtype=jnp.float32)
    params = init_params(k_p, D)

    out = jax.block_until_ready(self_attention(x, params))
    ref = self_attention_ref(x, params)

    assert out.shape == (B, S, D)
    # Tolerance relaxed slightly because the softmax normalization uses
    # pl.reciprocal(approx=True) (EUP fast reciprocal, ~2^-12 relative error).
    assert jnp.allclose(out, ref, atol=2e-3, rtol=2e-3), "mismatch vs reference"

    print("KERNEL_OK")
</pallas_src>

<mosaic_0001>
module attributes {stable_mosaic.version = 11 : i64} {
  func.func @kernel(%arg0: i32, %arg1: i32, %arg2: i32, %arg3: memref<1x128x128xf32, #tpu.memory_space<vmem>>, %arg4: memref<1x128x128xf32, #tpu.memory_space<vmem>>, %arg5: memref<128x128xf32, #tpu.memory_space<vmem>>, %arg6: memref<1x128xf32, #tpu.memory_space<vmem>>, %arg7: memref<128x128xf32, #tpu.memory_space<vmem>>, %arg8: memref<1x128xf32, #tpu.memory_space<vmem>>, %arg9: memref<128x128xf32, #tpu.memory_space<vmem>>, %arg10: memref<1x128xf32, #tpu.memory_space<vmem>>, %arg11: memref<128x128xf32, #tpu.memory_space<vmem>>, %arg12: memref<1x128xf32, #tpu.memory_space<vmem>>, %arg13: memref<1x128x128xf32, #tpu.memory_space<vmem>>, %arg14: memref<128x128xf32, #tpu.memory_space<vmem>>, %arg15: memref<128x1xf32, #tpu.memory_space<vmem>>, %arg16: memref<128x1xf32, #tpu.memory_space<vmem>>, %arg17: memref<128x128xf32, #tpu.memory_space<vmem>>, %arg18: memref<256x128xf32, #tpu.memory_space<vmem>>, %arg19: memref<256x128xf32, #tpu.memory_space<vmem>>) attributes {dimension_semantics = [#tpu.dimension_semantics<parallel>, #tpu.dimension_semantics<arbitrary>, #tpu.dimension_semantics<arbitrary>], iteration_bounds = array<i64: 2, 2, 2>, scalar_prefetch = 0 : i64, scratch_operands = 6 : i64, tpu.core_type = #tpu.core_type<tc>, window_params = [{transform_indices = @transform_0, window_bounds = array<i64: 1, 128, 128>}, {transform_indices = @transform_1, window_bounds = array<i64: 1, 128, 128>}, {pipeline_mode = #tpu.pipeline_mode<synchronous>, transform_indices = @transform_2, window_bounds = array<i64: 128, 128>}, {pipeline_mode = #tpu.pipeline_mode<synchronous>, transform_indices = @transform_3, window_bounds = array<i64: 1, 128>}, {pipeline_mode = #tpu.pipeline_mode<synchronous>, transform_indices = @transform_4, window_bounds = array<i64: 128, 128>}, {pipeline_mode = #tpu.pipeline_mode<synchronous>, transform_indices = @transform_5, window_bounds = array<i64: 1, 128>}, {pipeline_mode = #tpu.pipeline_mode<synchronous>, transform_indices = @transform_6, window_bounds = array<i64: 128, 128>}, {pipeline_mode = #tpu.pipeline_mode<synchronous>, transform_indices = @transform_7, window_bounds = array<i64: 1, 128>}, {pipeline_mode = #tpu.pipeline_mode<synchronous>, transform_indices = @transform_8, window_bounds = array<i64: 128, 128>}, {pipeline_mode = #tpu.pipeline_mode<synchronous>, transform_indices = @transform_9, window_bounds = array<i64: 1, 128>}, {transform_indices = @transform_10, window_bounds = array<i64: 1, 128, 128>}]} {
    %c0_i32 = arith.constant 0 : i32
    %0 = arith.cmpi eq, %arg2, %c0_i32 : i32
    %1 = arith.extui %0 : i1 to i32
    %c0_i32_0 = arith.constant 0 : i32
    %2 = arith.cmpi ne, %1, %c0_i32_0 : i32
    scf.if %2 {
      %c0_22 = arith.constant 0 : index
      %c0_23 = arith.constant 0 : index
      %c0_24 = arith.constant 0 : index
      %39 = vector.load %arg3[%c0_22, %c0_23, %c0_24] : memref<1x128x128xf32, #tpu.memory_space<vmem>>, vector<1x128x128xf32>
      %40 = vector.shape_cast %39 : vector<1x128x128xf32> to vector<128x128xf32>
      %c0_25 = arith.constant 0 : index
      %c0_26 = arith.constant 0 : index
      %41 = vector.load %arg5[%c0_25, %c0_26] : memref<128x128xf32, #tpu.memory_space<vmem>>, vector<128x128xf32>
      %cst_27 = arith.constant dense<0.000000e+00> : vector<128x128xf32>
      %42 = tpu.matmul %40, %41, %cst_27 {dimension_numbers = #tpu.dot_dimension_numbers<[1], [0], [0], [1], [0, 0, 1, 1], [], []>} : vector<128x128xf32>, vector<128x128xf32>, vector<128x128xf32> -> vector<128x128xf32>
      %c0_28 = arith.constant 0 : index
      %c0_29 = arith.constant 0 : index
      %43 = vector.load %arg6[%c0_28, %c0_29] : memref<1x128xf32, #tpu.memory_space<vmem>>, vector<1x128xf32>
      %44 = vector.broadcast %43 : vector<1x128xf32> to vector<128x128xf32>
      %45 = arith.addf %42, %44 : vector<128x128xf32>
      %cst_30 = arith.constant 1.280000e+02 : f32
      %46 = math.sqrt %cst_30 : f32
      %cst_31 = arith.constant 1.000000e+00 : f32
      %47 = arith.divf %cst_31, %46 : f32
      %48 = vector.broadcast %47 : f32 to vector<128x128xf32>
      %49 = arith.mulf %45, %48 : vector<128x128xf32>
      %c0_32 = arith.constant 0 : index
      %c0_33 = arith.constant 0 : index
      %50 = vector.load %arg14[%c0_32, %c0_33] : memref<128x128xf32, #tpu.memory_space<vmem>>, vector<128x128xf32>
      tpu.vector_store %arg14[%c0_32, %c0_33], %49 {strides = array<i32>} : memref<128x128xf32, #tpu.memory_space<vmem>>, vector<128x128xf32>,
      %cst_34 = arith.constant 0xFF800000 : f32
      %51 = vector.broadcast %cst_34 : f32 to vector<128x1xf32>
      %c0_35 = arith.constant 0 : index
      %c0_36 = arith.constant 0 : index
      %52 = vector.load %arg15[%c0_35, %c0_36] : memref<128x1xf32, #tpu.memory_space<vmem>>, vector<128x1xf32>
      tpu.vector_store %arg15[%c0_35, %c0_36], %51 {strides = array<i32>} : memref<128x1xf32, #tpu.memory_space<vmem>>, vector<128x1xf32>,
      %cst_37 = arith.constant 0.000000e+00 : f32
      %53 = vector.broadcast %cst_37 : f32 to vector<128x1xf32>
      %c0_38 = arith.constant 0 : index
      %c0_39 = arith.constant 0 : index
      %54 = vector.load %arg16[%c0_38, %c0_39] : memref<128x1xf32, #tpu.memory_space<vmem>>, vector<128x1xf32>
      tpu.vector_store %arg16[%c0_38, %c0_39], %53 {strides = array<i32>} : memref<128x1xf32, #tpu.memory_space<vmem>>, vector<128x1xf32>,
      %cst_40 = arith.constant 0.000000e+00 : f32
      %55 = vector.broadcast %cst_40 : f32 to vector<128x128xf32>
      %c0_41 = arith.constant 0 : index
      %c0_42 = arith.constant 0 : index
      %56 = vector.load %arg17[%c0_41, %c0_42] : memref<128x128xf32, #tpu.memory_space<vmem>>, vector<128x128xf32>
      tpu.vector_store %arg17[%c0_41, %c0_42], %55 {strides = array<i32>} : memref<128x128xf32, #tpu.memory_space<vmem>>, vector<128x128xf32>,
    } else {
    }
    %c128_i32 = arith.constant 128 : i32
    %3 = arith.muli %arg2, %c128_i32 : i32
    %4 = tpu.assume_multiple %3, 128 : i32
    %c0_i32_1 = arith.constant 0 : i32
    %5 = arith.cmpi eq, %arg1, %c0_i32_1 : i32
    %6 = arith.extui %5 : i1 to i32
    %c0_i32_2 = arith.constant 0 : i32
    %7 = arith.cmpi ne, %6, %c0_i32_2 : i32
    scf.if %7 {
      %c0_22 = arith.constant 0 : index
      %c0_23 = arith.constant 0 : index
      %c0_24 = arith.constant 0 : index
      %39 = vector.load %arg4[%c0_22, %c0_23, %c0_24] : memref<1x128x128xf32, #tpu.memory_space<vmem>>, vector<1x128x128xf32>
      %40 = vector.shape_cast %39 : vector<1x128x128xf32> to vector<128x128xf32>
      %c0_25 = arith.constant 0 : index
      %c0_26 = arith.constant 0 : index
      %41 = vector.load %arg7[%c0_25, %c0_26] : memref<128x128xf32, #tpu.memory_space<vmem>>, vector<128x128xf32>
      %cst_27 = arith.constant dense<0.000000e+00> : vector<128x128xf32>
      %42 = tpu.matmul %40, %41, %cst_27 {dimension_numbers = #tpu.dot_dimension_numbers<[1], [0], [0], [1], [0, 0, 1, 1], [], []>} : vector<128x128xf32>, vector<128x128xf32>, vector<128x128xf32> -> vector<128x128xf32>
      %c0_28 = arith.constant 0 : index
      %c0_29 = arith.constant 0 : index
      %43 = vector.load %arg8[%c0_28, %c0_29] : memref<1x128xf32, #tpu.memory_space<vmem>>, vector<1x128xf32>
      %44 = vector.broadcast %43 : vector<1x128xf32> to vector<128x128xf32>
      %45 = arith.addf %42, %44 : vector<128x128xf32>
      %c0_30 = arith.constant 0 : index
      %c0_31 = arith.constant 0 : index
      %46 = vector.load %arg9[%c0_30, %c0_31] : memref<128x128xf32, #tpu.memory_space<vmem>>, vector<128x128xf32>
      %cst_32 = arith.constant dense<0.000000e+00> : vector<128x128xf32>
      %47 = tpu.matmul %40, %46, %cst_32 {dimension_numbers = #tpu.dot_dimension_numbers<[1], [0], [0], [1], [0, 0, 1, 1], [], []>} : vector<128x128xf32>, vector<128x128xf32>, vector<128x128xf32> -> vector<128x128xf32>
      %c0_33 = arith.constant 0 : index
      %c0_34 = arith.constant 0 : index
      %48 = vector.load %arg10[%c0_33, %c0_34] : memref<1x128xf32, #tpu.memory_space<vmem>>, vector<1x128xf32>
      %49 = vector.broadcast %48 : vector<1x128xf32> to vector<128x128xf32>
      %50 = arith.addf %47, %49 : vector<128x128xf32>
      %51 = arith.index_cast %4 : i32 to index
      %c0_35 = arith.constant 0 : index
      %52 = vector.load %arg18[%51, %c0_35] : memref<256x128xf32, #tpu.memory_space<vmem>>, vector<128x128xf32>
      tpu.vector_store %arg18[%51, %c0_35], %45 {strides = array<i32>} : memref<256x128xf32, #tpu.memory_space<vmem>>, vector<128x128xf32>,
      %53 = arith.index_cast %4 : i32 to index
      %c0_36 = arith.constant 0 : index
      %54 = vector.load %arg19[%53, %c0_36] : memref<256x128xf32, #tpu.memory_space<vmem>>, vector<128x128xf32>
      tpu.vector_store %arg19[%53, %c0_36], %50 {strides = array<i32>} : memref<256x128xf32, #tpu.memory_space<vmem>>, vector<128x128xf32>,
    } else {
    }
    %8 = arith.index_cast %4 : i32 to index
    %c0 = arith.constant 0 : index
    %9 = vector.load %arg18[%8, %c0] : memref<256x128xf32, #tpu.memory_space<vmem>>, vector<128x128xf32>
    %10 = arith.index_cast %4 : i32 to index
    %c0_3 = arith.constant 0 : index
    %11 = vector.load %arg19[%10, %c0_3] : memref<256x128xf32, #tpu.memory_space<vmem>>, vector<128x128xf32>
    %c0_4 = arith.constant 0 : index
    %c0_5 = arith.constant 0 : index
    %12 = vector.load %arg14[%c0_4, %c0_5] : memref<128x128xf32, #tpu.memory_space<vmem>>, vector<128x128xf32>
    %cst = arith.constant dense<0.000000e+00> : vector<128x128xf32>
    %13 = tpu.matmul %12, %9, %cst {dimension_numbers = #tpu.dot_dimension_numbers<[1], [1], [0], [0], [0, 0, 1, 0], [], []>} : vector<128x128xf32>, vector<128x128xf32>, vector<128x128xf32> -> vector<128x128xf32>
    %c0_6 = arith.constant 0 : index
    %c0_7 = arith.constant 0 : index
    %14 = vector.load %arg15[%c0_6, %c0_7] : memref<128x1xf32, #tpu.memory_space<vmem>>, vector<128x1xf32>
    %cst_8 = arith.constant dense<0xFF800000> : vector<128xf32>
    %15 = vector.multi_reduction <maximumf>, %13, %cst_8 [1] : vector<128x128xf32> to vector<128xf32>
    %16 = vector.shape_cast %15 : vector<128xf32> to vector<128x1xf32>
    %17 = arith.maximumf %14, %16 : vector<128x1xf32>
    %18 = arith.subf %14, %17 : vector<128x1xf32>
    %19 = math.exp %18 : vector<128x1xf32>
    %20 = vector.broadcast %17 : vector<128x1xf32> to vector<128x128xf32>
    %21 = arith.subf %13, %20 : vector<128x128xf32>
    %22 = math.exp %21 : vector<128x128xf32>
    %c0_9 = arith.constant 0 : index
    %c0_10 = arith.constant 0 : index
    %23 = vector.load %arg16[%c0_9, %c0_10] : memref<128x1xf32, #tpu.memory_space<vmem>>, vector<128x1xf32>
    %24 = arith.mulf %19, %23 : vector<128x1xf32>
    %cst_11 = arith.constant dense<0.000000e+00> : vector<128xf32>
    %25 = vector.multi_reduction <add>, %22, %cst_11 [1] : vector<128x128xf32> to vector<128xf32>
    %26 = vector.shape_cast %25 : vector<128xf32> to vector<128x1xf32>
    %27 = arith.addf %24, %26 : vector<128x1xf32>
    %c0_12 = arith.constant 0 : index
    %c0_13 = arith.constant 0 : index
    %28 = vector.load %arg16[%c0_12, %c0_13] : memref<128x1xf32, #tpu.memory_space<vmem>>, vector<128x1xf32>
    tpu.vector_store %arg16[%c0_12, %c0_13], %27 {strides = array<i32>} : memref<128x1xf32, #tpu.memory_space<vmem>>, vector<128x1xf32>,
    %c0_14 = arith.constant 0 : index
    %c0_15 = arith.constant 0 : index
    %29 = vector.load %arg17[%c0_14, %c0_15] : memref<128x128xf32, #tpu.memory_space<vmem>>, vector<128x128xf32>
    %30 = vector.broadcast %19 : vector<128x1xf32> to vector<128x128xf32>
    %31 = arith.mulf %30, %29 : vector<128x128xf32>
    %cst_16 = arith.constant dense<0.000000e+00> : vector<128x128xf32>
    %32 = tpu.matmul %22, %11, %cst_16 {dimension_numbers = #tpu.dot_dimension_numbers<[1], [0], [0], [1], [0, 0, 1, 1], [], []>} : vector<128x128xf32>, vector<128x128xf32>, vector<128x128xf32> -> vector<128x128xf32>
    %33 = arith.addf %31, %32 : vector<128x128xf32>
    %c0_17 = arith.constant 0 : index
    %c0_18 = arith.constant 0 : index
    %34 = vector.load %arg17[%c0_17, %c0_18] : memref<128x128xf32, #tpu.memory_space<vmem>>, vector<128x128xf32>
    tpu.vector_store %arg17[%c0_17, %c0_18], %33 {strides = array<i32>} : memref<128x128xf32, #tpu.memory_space<vmem>>, vector<128x128xf32>,
    %c0_19 = arith.constant 0 : index
    %c0_20 = arith.constant 0 : index
    %35 = vector.load %arg15[%c0_19, %c0_20] : memref<128x1xf32, #tpu.memory_space<vmem>>, vector<128x1xf32>
    tpu.vector_store %arg15[%c0_19, %c0_20], %17 {strides = array<i32>} : memref<128x1xf32, #tpu.memory_space<vmem>>, vector<128x1xf32>,
    %c1_i32 = arith.constant 1 : i32
    %36 = arith.cmpi eq, %arg2, %c1_i32 : i32
    %37 = arith.extui %36 : i1 to i32
    %c0_i32_21 = arith.constant 0 : i32
    %38 = arith.cmpi ne, %37, %c0_i32_21 : i32
    scf.if %38 {
      %c0_22 = arith.constant 0 : index
      %c0_23 = arith.constant 0 : index
      %39 = vector.load %arg16[%c0_22, %c0_23] : memref<128x1xf32, #tpu.memory_space<vmem>>, vector<128x1xf32>
      %40 = tpu.reciprocal %39 {approx = true} : vector<128x1xf32> -> vector<128x1xf32>
      %c0_24 = arith.constant 0 : index
      %c0_25 = arith.constant 0 : index
      %41 = vector.load %arg17[%c0_24, %c0_25] : memref<128x128xf32, #tpu.memory_space<vmem>>, vector<128x128xf32>
      %42 = vector.broadcast %40 : vector<128x1xf32> to vector<128x128xf32>
      %43 = arith.mulf %41, %42 : vector<128x128xf32>
      %c0_26 = arith.constant 0 : index
      %c0_27 = arith.constant 0 : index
      %44 = vector.load %arg11[%c0_26, %c0_27] : memref<128x128xf32, #tpu.memory_space<vmem>>, vector<128x128xf32>
      %cst_28 = arith.constant dense<0.000000e+00> : vector<128x128xf32>
      %45 = tpu.matmul %43, %44, %cst_28 {dimension_numbers = #tpu.dot_dimension_numbers<[1], [0], [0], [1], [0, 0, 1, 1], [], []>} : vector<128x128xf32>, vector<128x128xf32>, vector<128x128xf32> -> vector<128x128xf32>
      %c0_29 = arith.constant 0 : index
      %c0_30 = arith.constant 0 : index
      %46 = vector.load %arg12[%c0_29, %c0_30] : memref<1x128xf32, #tpu.memory_space<vmem>>, vector<1x128xf32>
      %47 = vector.broadcast %46 : vector<1x128xf32> to vector<128x128xf32>
      %48 = arith.addf %45, %47 : vector<128x128xf32>
      %c0_31 = arith.constant 0 : index
      %c0_32 = arith.constant 0 : index
      %c0_33 = arith.constant 0 : index
      %49 = vector.load %arg13[%c0_31, %c0_32, %c0_33] : memref<1x128x128xf32, #tpu.memory_space<vmem>>, vector<1x128x128xf32>
      %50 = vector.shape_cast %49 : vector<1x128x128xf32> to vector<128x128xf32>
      %51 = vector.shape_cast %48 : vector<128x128xf32> to vector<1x128x128xf32>
      tpu.vector_store %arg13[%c0_31, %c0_32, %c0_33], %51 {strides = array<i32>} : memref<1x128x128xf32, #tpu.memory_space<vmem>>, vector<1x128x128xf32>,
    } else {
    }
    return
  }
  func.func @transform_0(%arg0: i32, %arg1: i32, %arg2: i32) -> (i32, i32, i32) {
    %c0_i32 = arith.constant 0 : i32
    %c0_i32_0 = arith.constant 0 : i32
    return %arg0, %arg1, %c0_i32 : i32, i32, i32
  }
  func.func @transform_1(%arg0: i32, %arg1: i32, %arg2: i32) -> (i32, i32, i32) {
    %c0_i32 = arith.constant 0 : i32
    %c0_i32_0 = arith.constant 0 : i32
    return %arg0, %arg2, %c0_i32 : i32, i32, i32
  }
  func.func @transform_2(%arg0: i32, %arg1: i32, %arg2: i32) -> (i32, i32) {
    %c0_i32 = arith.constant 0 : i32
    %c0_i32_0 = arith.constant 0 : i32
    %c0_i32_1 = arith.constant 0 : i32
    return %c0_i32, %c0_i32_0 : i32, i32
  }
  func.func @transform_3(%arg0: i32, %arg1: i32, %arg2: i32) -> (i32, i32) {
    %c0_i32 = arith.constant 0 : i32
    %c0_i32_0 = arith.constant 0 : i32
    %c0_i32_1 = arith.constant 0 : i32
    return %c0_i32, %c0_i32_0 : i32, i32
  }
  func.func @transform_4(%arg0: i32, %arg1: i32, %arg2: i32) -> (i32, i32) {
    %c0_i32 = arith.constant 0 : i32
    %c0_i32_0 = arith.constant 0 : i32
    %c0_i32_1 = arith.constant 0 : i32
    return %c0_i32, %c0_i32_0 : i32, i32
  }
  func.func @transform_5(%arg0: i32, %arg1: i32, %arg2: i32) -> (i32, i32) {
    %c0_i32 = arith.constant 0 : i32
    %c0_i32_0 = arith.constant 0 : i32
    %c0_i32_1 = arith.constant 0 : i32
    return %c0_i32, %c0_i32_0 : i32, i32
  }
  func.func @transform_6(%arg0: i32, %arg1: i32, %arg2: i32) -> (i32, i32) {
    %c0_i32 = arith.constant 0 : i32
    %c0_i32_0 = arith.constant 0 : i32
    %c0_i32_1 = arith.constant 0 : i32
    return %c0_i32, %c0_i32_0 : i32, i32
  }
  func.func @transform_7(%arg0: i32, %arg1: i32, %arg2: i32) -> (i32, i32) {
    %c0_i32 = arith.constant 0 : i32
    %c0_i32_0 = arith.constant 0 : i32
    %c0_i32_1 = arith.constant 0 : i32
    return %c0_i32, %c0_i32_0 : i32, i32
  }
  func.func @transform_8(%arg0: i32, %arg1: i32, %arg2: i32) -> (i32, i32) {
    %c0_i32 = arith.constant 0 : i32
    %c0_i32_0 = arith.constant 0 : i32
    %c0_i32_1 = arith.constant 0 : i32
    return %c0_i32, %c0_i32_0 : i32, i32
  }
  func.func @transform_9(%arg0: i32, %arg1: i32, %arg2: i32) -> (i32, i32) {
    %c0_i32 = arith.constant 0 : i32
    %c0_i32_0 = arith.constant 0 : i32
    %c0_i32_1 = arith.constant 0 : i32
    return %c0_i32, %c0_i32_0 : i32, i32
  }
  func.func @transform_10(%arg0: i32, %arg1: i32, %arg2: i32) -> (i32, i32, i32) {
    %c0_i32 = arith.constant 0 : i32
    %c0_i32_0 = arith.constant 0 : i32
    return %arg0, %arg1, %c0_i32 : i32, i32, i32
  }
}

</mosaic_0001>

<llo_original>
// kernel: tpu_custom_call.1
$region0: #{tpu_custom_call.1}
  #allocation0 [shape = 'u32[]', space=smem, size = 0x4, offset = 0x4, fixed_abs, tag = 'smem constant byte address 0x4 - core index']
  #allocation1 [shape = 'u32[144,128]{1,0:T(1,128)}', space=vmem, size = 0x12000, scoped, tag = 'internal scratch']
  #allocation2 [shape = 'f32[128,128]{1,0:T(8,128)}', space=vmem, size = 0x10000, scoped, tag = 'scratch operand']
  #allocation3 [shape = 'f32[128,1]{1,0:T(8,128)}', space=vmem, size = 0x10000, scoped, tag = 'scratch operand']
  #allocation4 [shape = 'f32[128,1]{1,0:T(8,128)}', space=vmem, size = 0x10000, scoped, tag = 'scratch operand']
  #allocation5 [shape = 'f32[128,128]{1,0:T(8,128)}', space=vmem, size = 0x10000, scoped, tag = 'scratch operand']
  #allocation6 [shape = 'f32[256,128]{1,0:T(8,128)}', space=vmem, size = 0x20000, scoped, tag = 'scratch operand']
  #allocation7 [shape = 'f32[256,128]{1,0:T(8,128)}', space=vmem, size = 0x20000, scoped, tag = 'scratch operand']
  %s0 = inlined_call_operand.hbm [shape: f32[2,256,128], index: 0, kind: input, shape index: {}]
  %s1 = inlined_call_operand.hbm [shape: f32[2,256,128], index: 1, kind: input, shape index: {}]
  %s2 = inlined_call_operand.hbm [shape: f32[128,128], index: 2, kind: input, shape index: {}]
  %s3 = inlined_call_operand.vmem [shape: f32[1,128], index: 3, kind: input, shape index: {}]
  %s4 = inlined_call_operand.hbm [shape: f32[128,128], index: 4, kind: input, shape index: {}]
  %s5 = inlined_call_operand.vmem [shape: f32[1,128], index: 5, kind: input, shape index: {}]
  %s6 = inlined_call_operand.hbm [shape: f32[128,128], index: 6, kind: input, shape index: {}]
  %s7 = inlined_call_operand.vmem [shape: f32[1,128], index: 7, kind: input, shape index: {}]
  %s8 = inlined_call_operand.hbm [shape: f32[128,128], index: 8, kind: input, shape index: {}]
  %s9 = inlined_call_operand.vmem [shape: f32[1,128], index: 9, kind: input, shape index: {}]
  %s10 = inlined_call_operand.hbm [shape: f32[2,256,128], index: 10, kind: output, shape index: {}]
  %s11 = sld [smem:[#allocation0]]
  $region109: #{tpu_custom_call.1} parent=0
    _
  %s13 = ssub.s32 1, %s11
  %s14 = scalar_select 0, %s13, %s11
  $region1: #{tpu_custom_call.1} parent=0
    #allocation8 [shape = 'u8[131072]{0}', space=vmem, size = 0x20000, scoped, tag = 'input window, operand 0']
    #allocation9 [shape = 's32[2]{0}', space=sflag, size = 0x8, scoped, tag = 'scoped memory for tpu_custom_call.1']
    #allocation10 [shape = 's32[2]{0}', space=sflag, size = 0x8, scoped, tag = 'scoped memory for tpu_custom_call.1']
    #allocation11 [shape = 'u8[131072]{0}', space=vmem, size = 0x20000, scoped, tag = 'input window, operand 1']
    #allocation12 [shape = 's32[2]{0}', space=sflag, size = 0x8, scoped, tag = 'scoped memory for tpu_custom_call.1']
    #allocation13 [shape = 'u8[65536]{0}', space=vmem, size = 0x10000, scoped, tag = 'input window, operand 2, single buffered']
    #allocation14 [shape = 'u8[65536]{0}', space=vmem, size = 0x10000, scoped, tag = 'input window, operand 4, single buffered']
    #allocation15 [shape = 's32[1]{0}', space=sflag, size = 0x4, scoped, tag = 'scoped memory for tpu_custom_call.1']
    #allocation16 [shape = 'u8[65536]{0}', space=vmem, size = 0x10000, scoped, tag = 'input window, operand 6, single buffered']
    #allocation17 [shape = 'u8[65536]{0}', space=vmem, size = 0x10000, scoped, tag = 'input window, operand 8, single buffered']
    #allocation18 [shape = 's32[1]{0}', space=sflag, size = 0x4, scoped, tag = 'scoped memory for tpu_custom_call.1']
    #allocation19 [shape = 'u8[131072]{0}', space=vmem, size = 0x20000, scoped, tag = 'output window, operand 0']
    %15 = vsyncpa [#allocation9], 0
    %s16 = scalar_lea.sflag [#allocation9], 1
    %17 = vsyncpa %s16, 0
    %18 = vsyncpa [#allocation12], 0
    %s19 = scalar_lea.sflag [#allocation12], 1
    %20 = vsyncpa %s19, 0
    %21 = vsyncpa [#allocation15], 0
    %22 = vsyncpa [#allocation18], 0
    %23 = vsyncpa [#allocation10], 0
    %s24 = scalar_lea.sflag [#allocation10], 1
    %25 = vsyncpa %s24, 0
    loop: start=0, step=1, limit=10
    $region2: #{tpu_custom_call.1} parent=1 // loop_pre_header
      _
    $region3: #{tpu_custom_call.1} parent=1 // loop_header
      %s27 = sphi 0, %s31
      %p28 = scmp.ge.s32.totalorder %s27, 10
      %s34 = sphi 0, %s53
      %s35 = sphi 0, %s49
      %s36 = sphi 0, %s45
      %s37 = sphi 0, %s34
      %s38 = sphi 0, %s35
      %s39 = sphi 0, %s36
      %s40 = sphi 0, %s37
      %s41 = sphi 0, %s38
      %s42 = sphi 0, %s39
      %s58 = sphi 0, %s60
      %s61 = sphi 0, %s58
      %s62 = sphi 0, %s61
      %s78 = sphi 0, %s62
      %s86 = sphi 0, %s88
      %s89 = sphi 0, %s86
      %s90 = sphi 0, %s89
      %s106 = sphi 0, %s90
      %s110 = sphi 0, %s110
      %s112 = sphi 0, %s110
      %s113 = sphi 0, %s112
      %s127 = sphi 0, %s113
      %s131 = sphi 0, %s131
      %s133 = sphi 0, %s131
      %s134 = sphi 0, %s133
      %s148 = sphi 0, %s134
      %s152 = sphi 0, %s152
      %s154 = sphi 0, %s152
      %s155 = sphi 0, %s154
      %s169 = sphi 0, %s155
      %s173 = sphi 0, %s173
      %s175 = sphi 0, %s173
      %s176 = sphi 0, %s175
      %s190 = sphi 0, %s176
      %s194 = sphi 0, %s194
      %s196 = sphi 0, %s194
      %s197 = sphi 0, %s196
      %s211 = sphi 0, %s197
      %s215 = sphi 0, %s215
      %s217 = sphi 0, %s215
      %s218 = sphi 0, %s217
      %s232 = sphi 0, %s218
      %s236 = sphi 0, %s236
      %s238 = sphi 0, %s236
      %s239 = sphi 0, %s238
      %s253 = sphi 0, %s239
      %s257 = sphi 0, %s257
      %s259 = sphi 0, %s257
      %s260 = sphi 0, %s259
      %s274 = sphi 0, %s260
      %s282 = sphi 0, %s284
      %s285 = sphi 0, %s282
      %s286 = sphi 0, %s285
      %s302 = sphi 0, %s286
    $region4: #{tpu_custom_call.1} parent=1 // loop_header_branch
      %30 = sbr.rel (%p28) target = $region8
    $region5: #{tpu_custom_call.1} parent=1 // loop_body
      %s32 = ssub.s32 %s27, 1
      %s33 = ssub.s32 %s27, 2
      %s43 = sadd.s32 1, %s36
      %p44 = scmp.ge.s32.totalorder %s43, 2
      %s45 = scalar_select %p44, 0, %s43
      %s46 = sadd.s32 1, %s35
      %s47 = scalar_select %p44, %s46, %s35
      %p48 = scmp.ge.s32.totalorder %s47, 2
      %s49 = scalar_select %p48, 0, %s47
      %s50 = sadd.s32 1, %s34
      %s51 = scalar_select %p48, %s50, %s34
      %p52 = scmp.ge.s32.totalorder %s51, 2
      %s53 = scalar_select %p52, 0, %s51
      %s54 = ssub.s32 %s34, %s53
      %s55 = ssub.s32 %s35, %s49
      %s56 = sor.u32 %s54, %s55
      %p57 = scmp.eq.s32.totalorder %s56, 0
      %s59 = sadd.s32 %s58, 1
      %s60 = scalar_select %p57, %s58, %s59
      %p63 = pneg %p57
      %p64 = scmp.eq.s32.totalorder %s27, 7
      %p65 = por %p63, %p64
      %p66 = scmp.ne.s32.totalorder %s58, %s61
      %p67 = scmp.eq.s32.totalorder %s27, 0
      %p68 = por %p66, %p67
      %p69 = scmp.ne.s32.totalorder %s58, %s61
      %p70 = scmp.eq.s32.totalorder %s32, 7
      %p71 = por %p69, %p70
      %p72 = scmp.ne.s32.totalorder %s61, %s62
      %p73 = scmp.eq.s32.totalorder %s32, 0
      %p74 = por %p72, %p73
      %p75 = scmp.ne.s32.totalorder %s61, %s62
      %p76 = scmp.eq.s32.totalorder %s33, 7
      %p77 = por %p75, %p76
      %p79 = scmp.ne.s32.totalorder %s62, %s78
      %p80 = scmp.eq.s32.totalorder %s33, 0
      %p81 = por %p79, %p80
      %s82 = ssub.s32 %s34, %s53
      %s83 = ssub.s32 %s36, %s45
      %s84 = sor.u32 %s82, %s83
      %p85 = scmp.eq.s32.totalorder %s84, 0
      %s87 = sadd.s32 %s86, 1
      %s88 = scalar_select %p85, %s86, %s87
      %p91 = pneg %p85
      %p92 = scmp.eq.s32.totalorder %s27, 7
      %p93 = por %p91, %p92
      %p94 = scmp.ne.s32.totalorder %s86, %s89
      %p95 = scmp.eq.s32.totalorder %s27, 0
      %p96 = por %p94, %p95
      %p97 = scmp.ne.s32.totalorder %s86, %s89
      %p98 = scmp.eq.s32.totalorder %s32, 7
      %p99 = por %p97, %p98
      %p100 = scmp.ne.s32.totalorder %s89, %s90
      %p101 = scmp.eq.s32.totalorder %s32, 0
      %p102 = por %p100, %p101
      %p103 = scmp.ne.s32.totalorder %s89, %s90
      %p104 = scmp.eq.s32.totalorder %s33, 7
      %p105 = por %p103, %p104
      %p107 = scmp.ne.s32.totalorder %s90, %s106
      %p108 = scmp.eq.s32.totalorder %s33, 0
      %p109 = por %p107, %p108
      %s111 = sadd.s32 %s110, 1
      %p114 = scmp.eq.s32.totalorder %s27, 7
      %p115 = scmp.ne.s32.totalorder %s110, %s112
      %p116 = scmp.eq.s32.totalorder %s27, 0
      %p117 = por %p115, %p116
      %p118 = scmp.ne.s32.totalorder %s110, %s112
      %p119 = scmp.eq.s32.totalorder %s32, 7
      %p120 = por %p118, %p119
      %p121 = scmp.ne.s32.totalorder %s112, %s113
      %p122 = scmp.eq.s32.totalorder %s32, 0
      %p123 = por %p121, %p122
      %p124 = scmp.ne.s32.totalorder %s112, %s113
      %p125 = scmp.eq.s32.totalorder %s33, 7
      %p126 = por %p124, %p125
      %p128 = scmp.ne.s32.totalorder %s113, %s127
      %p129 = scmp.eq.s32.totalorder %s33, 0
      %p130 = por %p128, %p129
      %s132 = sadd.s32 %s131, 1
      %p135 = scmp.eq.s32.totalorder %s27, 7
      %p136 = scmp.ne.s32.totalorder %s131, %s133
      %p137 = scmp.eq.s32.totalorder %s27, 0
      %p138 = por %p136, %p137
      %p139 = scmp.ne.s32.totalorder %s131, %s133
      %p140 = scmp.eq.s32.totalorder %s32, 7
      %p141 = por %p139, %p140
      %p142 = scmp.ne.s32.totalorder %s133, %s134
      %p143 = scmp.eq.s32.totalorder %s32, 0
      %p144 = por %p142, %p143
      %p145 = scmp.ne.s32.totalorder %s133, %s134
      %p146 = scmp.eq.s32.totalorder %s33, 7
      %p147 = por %p145, %p146
      %p149 = scmp.ne.s32.totalorder %s134, %s148
      %p150 = scmp.eq.s32.totalorder %s33, 0
      %p151 = por %p149, %p150
      %s153 = sadd.s32 %s152, 1
      %p156 = scmp.eq.s32.totalorder %s27, 7
      %p157 = scmp.ne.s32.totalorder %s152, %s154
      %p158 = scmp.eq.s32.totalorder %s27, 0
      %p159 = por %p157, %p158
      %p160 = scmp.ne.s32.totalorder %s152, %s154
      %p161 = scmp.eq.s32.totalorder %s32, 7
      %p162 = por %p160, %p161
      %p163 = scmp.ne.s32.totalorder %s154, %s155
      %p164 = scmp.eq.s32.totalorder %s32, 0
      %p165 = por %p163, %p164
      %p166 = scmp.ne.s32.totalorder %s154, %s155
      %p167 = scmp.eq.s32.totalorder %s33, 7
      %p168 = por %p166, %p167
      %p170 = scmp.ne.s32.totalorder %s155, %s169
      %p171 = scmp.eq.s32.totalorder %s33, 0
      %p172 = por %p170, %p171
      %s174 = sadd.s32 %s173, 1
      %p177 = scmp.eq.s32.totalorder %s27, 7
      %p178 = scmp.ne.s32.totalorder %s173, %s175
      %p179 = scmp.eq.s32.totalorder %s27, 0
      %p180 = por %p178, %p179
      %p181 = scmp.ne.s32.totalorder %s173, %s175
      %p182 = scmp.eq.s32.totalorder %s32, 7
      %p183 = por %p181, %p182
      %p184 = scmp.ne.s32.totalorder %s175, %s176
      %p185 = scmp.eq.s32.totalorder %s32, 0
      %p186 = por %p184, %p185
      %p187 = scmp.ne.s32.totalorder %s175, %s176
      %p188 = scmp.eq.s32.totalorder %s33, 7
      %p189 = por %p187, %p188
      %p191 = scmp.ne.s32.totalorder %s176, %s190
      %p192 = scmp.eq.s32.totalorder %s33, 0
      %p193 = por %p191, %p192
      %s195 = sadd.s32 %s194, 1
      %p198 = scmp.eq.s32.totalorder %s27, 7
      %p199 = scmp.ne.s32.totalorder %s194, %s196
      %p200 = scmp.eq.s32.totalorder %s27, 0
      %p201 = por %p199, %p200
      %p202 = scmp.ne.s32.totalorder %s194, %s196
      %p203 = scmp.eq.s32.totalorder %s32, 7
      %p204 = por %p202, %p203
      %p205 = scmp.ne.s32.totalorder %s196, %s197
      %p206 = scmp.eq.s32.totalorder %s32, 0
      %p207 = por %p205, %p206
      %p208 = scmp.ne.s32.totalorder %s196, %s197
      %p209 = scmp.eq.s32.totalorder %s33, 7
      %p210 = por %p208, %p209
      %p212 = scmp.ne.s32.totalorder %s197, %s211
      %p213 = scmp.eq.s32.totalorder %s33, 0
      %p214 = por %p212, %p213
      %s216 = sadd.s32 %s215, 1
      %p219 = scmp.eq.s32.totalorder %s27, 7
      %p220 = scmp.ne.s32.totalorder %s215, %s217
      %p221 = scmp.eq.s32.totalorder %s27, 0
      %p222 = por %p220, %p221
      %p223 = scmp.ne.s32.totalorder %s215, %s217
      %p224 = scmp.eq.s32.totalorder %s32, 7
      %p225 = por %p223, %p224
      %p226 = scmp.ne.s32.totalorder %s217, %s218
      %p227 = scmp.eq.s32.totalorder %s32, 0
      %p228 = por %p226, %p227
      %p229 = scmp.ne.s32.totalorder %s217, %s218
      %p230 = scmp.eq.s32.totalorder %s33, 7
      %p231 = por %p229, %p230
      %p233 = scmp.ne.s32.totalorder %s218, %s232
      %p234 = scmp.eq.s32.totalorder %s33, 0
      %p235 = por %p233, %p234
      %s237 = sadd.s32 %s236, 1
      %p240 = scmp.eq.s32.totalorder %s27, 7
      %p241 = scmp.ne.s32.totalorder %s236, %s238
      %p242 = scmp.eq.s32.totalorder %s27, 0
      %p243 = por %p241, %p242
      %p244 = scmp.ne.s32.totalorder %s236, %s238
      %p245 = scmp.eq.s32.totalorder %s32, 7
      %p246 = por %p244, %p245
      %p247 = scmp.ne.s32.totalorder %s238, %s239
      %p248 = scmp.eq.s32.totalorder %s32, 0
      %p249 = por %p247, %p248
      %p250 = scmp.ne.s32.totalorder %s238, %s239
      %p251 = scmp.eq.s32.totalorder %s33, 7
      %p252 = por %p250, %p251
      %p254 = scmp.ne.s32.totalorder %s239, %s253
      %p255 = scmp.eq.s32.totalorder %s33, 0
      %p256 = por %p254, %p255
      %s258 = sadd.s32 %s257, 1
      %p261 = scmp.eq.s32.totalorder %s27, 7
      %p262 = scmp.ne.s32.totalorder %s257, %s259
      %p263 = scmp.eq.s32.totalorder %s27, 0
      %p264 = por %p262, %p263
      %p265 = scmp.ne.s32.totalorder %s257, %s259
      %p266 = scmp.eq.s32.totalorder %s32, 7
      %p267 = por %p265, %p266
      %p268 = scmp.ne.s32.totalorder %s259, %s260
      %p269 = scmp.eq.s32.totalorder %s32, 0
      %p270 = por %p268, %p269
      %p271 = scmp.ne.s32.totalorder %s259, %s260
      %p272 = scmp.eq.s32.totalorder %s33, 7
      %p273 = por %p271, %p272
      %p275 = scmp.ne.s32.totalorder %s260, %s274
      %p276 = scmp.eq.s32.totalorder %s33, 0
      %p277 = por %p275, %p276
      %s278 = ssub.s32 %s34, %s53
      %s279 = ssub.s32 %s35, %s49
      %s280 = sor.u32 %s278, %s279
      %p281 = scmp.eq.s32.totalorder %s280, 0
      %s283 = sadd.s32 %s282, 1
      %s284 = scalar_select %p281, %s282, %s283
      %p287 = pneg %p281
      %p288 = scmp.eq.s32.totalorder %s27, 7
      %p289 = por %p287, %p288
      %p290 = scmp.ne.s32.totalorder %s282, %s285
      %p291 = scmp.eq.s32.totalorder %s27, 0
      %p292 = por %p290, %p291
      %p293 = scmp.ne.s32.totalorder %s282, %s285
      %p294 = scmp.eq.s32.totalorder %s32, 7
      %p295 = por %p293, %p294
      %p296 = scmp.ne.s32.totalorder %s285, %s286
      %p297 = scmp.eq.s32.totalorder %s32, 0
      %p298 = por %p296, %p297
      %p299 = scmp.ne.s32.totalorder %s285, %s286
      %p300 = scmp.eq.s32.totalorder %s33, 7
      %p301 = por %p299, %p300
      %p303 = scmp.ne.s32.totalorder %s286, %s302
      %p304 = scmp.eq.s32.totalorder %s33, 0
      %p305 = por %p303, %p304
      %p306 = scmp.le.s32.totalorder 1, %s27
      %p307 = scmp.lt.s32.totalorder %s27, 9
      %p308 = pnand %p306, %p307
      %p309 = pneg %p308
      // Predicated region
      $region9: #{tpu_custom_call.1} parent=5 // pred_check
        _
      $region10: #{tpu_custom_call.1} parent=5 // pred_check_branch
        %311 = sbr.rel (%p308) target = $region12
      $region11: #{tpu_custom_call.1} parent=5 // pred_region
        %s312 = ssub.s32 %s27, 1
        // Predicated region
        $region13: #{tpu_custom_call.1} parent=11 // pred_check
          %p313 = pneg %p123
        $region14: #{tpu_custom_call.1} parent=11 // pred_check_branch
          %315 = sbr.rel (%p313) target = $region16
        $region15: #{tpu_custom_call.1} parent=11 // pred_region
          %s317 = ssub.s32 2048, 2048
          %318 = vsyncadd [#allocation12], %s317
          %s319 = sshll.u32 [#allocation13], 4
          %s320 = int_to_ptr.vmem [resolvable:$true] %s319
          %325 = dma.hbm_to_vmem [thread:$0]  %s2, 2048, %s320, [#allocation12], 128, 128, 8
        $region16: #{tpu_custom_call.1} parent=11 // pred_fallthru
          _
        // Predicated region
        $region17: #{tpu_custom_call.1} parent=11 // pred_check
          %p326 = pneg %p144
        $region18: #{tpu_custom_call.1} parent=11 // pred_check_branch
          %328 = sbr.rel (%p326) target = $region20
        $region19: #{tpu_custom_call.1} parent=11 // pred_region
          _
        $region20: #{tpu_custom_call.1} parent=11 // pred_fallthru
          _
        // Predicated region
        $region21: #{tpu_custom_call.1} parent=11 // pred_check
          %p329 = pneg %p165
        $region22: #{tpu_custom_call.1} parent=11 // pred_check_branch
          %331 = sbr.rel (%p329) target = $region24
        $region23: #{tpu_custom_call.1} parent=11 // pred_region
          %s333 = ssub.s32 2048, 2048
          %334 = vsyncadd [#allocation15], %s333
          %s335 = sshll.u32 [#allocation14], 4
          %s336 = int_to_ptr.vmem [resolvable:$true] %s335
          %341 = dma.hbm_to_vmem [thread:$0]  %s4, 2048, %s336, [#allocation15], 128, 128, 8
        $region24: #{tpu_custom_call.1} parent=11 // pred_fallthru
          _
        // Predicated region
        $region25: #{tpu_custom_call.1} parent=11 // pred_check
          %p342 = pneg %p186
        $region26: #{tpu_custom_call.1} parent=11 // pred_check_branch
          %344 = sbr.rel (%p342) target = $region28
        $region27: #{tpu_custom_call.1} parent=11 // pred_region
          _
        $region28: #{tpu_custom_call.1} parent=11 // pred_fallthru
          _
        // Predicated region
        $region29: #{tpu_custom_call.1} parent=11 // pred_check
          %p345 = pneg %p207
        $region30: #{tpu_custom_call.1} parent=11 // pred_check_branch
          %347 = sbr.rel (%p345) target = $region32
        $region31: #{tpu_custom_call.1} parent=11 // pred_region
          %s349 = ssub.s32 2048, 2048
          %350 = vsyncadd [#allocation15], %s349
          %s351 = sshll.u32 [#allocation16], 4
          %s352 = int_to_ptr.vmem [resolvable:$true] %s351
          %357 = dma.hbm_to_vmem [thread:$0]  %s6, 2048, %s352, [#allocation15], 128, 128, 8
        $region32: #{tpu_custom_call.1} parent=11 // pred_fallthru
          _
        // Predicated region
        $region33: #{tpu_custom_call.1} parent=11 // pred_check
          %p358 = pneg %p228
        $region34: #{tpu_custom_call.1} parent=11 // pred_check_branch
          %360 = sbr.rel (%p358) target = $region36
        $region35: #{tpu_custom_call.1} parent=11 // pred_region
          _
        $region36: #{tpu_custom_call.1} parent=11 // pred_fallthru
          _
        // Predicated region
        $region37: #{tpu_custom_call.1} parent=11 // pred_check
          %p361 = pneg %p249
        $region38: #{tpu_custom_call.1} parent=11 // pred_check_branch
          %363 = sbr.rel (%p361) target = $region40
        $region39: #{tpu_custom_call.1} parent=11 // pred_region
          %s365 = ssub.s32 2048, 2048
          %366 = vsyncadd [#allocation18], %s365
          %s367 = sshll.u32 [#allocation17], 4
          %s368 = int_to_ptr.vmem [resolvable:$true] %s367
          %373 = dma.hbm_to_vmem [thread:$0]  %s8, 2048, %s368, [#allocation18], 128, 128, 8
        $region40: #{tpu_custom_call.1} parent=11 // pred_fallthru
          _
        // Predicated region
        $region41: #{tpu_custom_call.1} parent=11 // pred_check
          %p374 = pneg %p270
        $region42: #{tpu_custom_call.1} parent=11 // pred_check_branch
          %376 = sbr.rel (%p374) target = $region44
        $region43: #{tpu_custom_call.1} parent=11 // pred_region
          _
        $region44: #{tpu_custom_call.1} parent=11 // pred_fallthru
          _
      $region12: #{tpu_custom_call.1} parent=5 // pred_fallthru
        _
      %p377 = scmp.lt.s32.totalorder %s27, 8
      // Predicated region
      $region45: #{tpu_custom_call.1} parent=5 // pred_check
        %p378 = pneg %p377
      $region46: #{tpu_custom_call.1} parent=5 // pred_check_branch
        %380 = sbr.rel (%p378) target = $region48
      $region47: #{tpu_custom_call.1} parent=5 // pred_region
        // Predicated region
        $region49: #{tpu_custom_call.1} parent=47 // pred_check
          %p381 = pneg %p68
        $region50: #{tpu_custom_call.1} parent=47 // pred_check_branch
          %383 = sbr.rel (%p381) target = $region52
        $region51: #{tpu_custom_call.1} parent=47 // pred_region
          %s384 = sand.u32 %s58, 1
          %s385 = scalar_lea.sflag [#allocation9], %s384
          %s386 = sand.u32 %s58, 1
          %s387 = smul.addr %s386, 128
          %s388 = scalar_lea.vmem [#allocation8], %s387
          %s389 = smul.u32 16, %s35
          %s391 = ssub.s32 2048, 2048
          %392 = vsyncadd %s385, %s391
          %s393 = smul.addr %s34, 32
          %s394 = sadd.s32 %s389, %s393
          %s395 = smul.addr %s394, 128
          %s396 = scalar_lea.hbm %s0, %s395
          %s397 = sshll.u32 %s388, 4
          %s398 = int_to_ptr.vmem [resolvable:$true] %s397
          %403 = dma.hbm_to_vmem [thread:$0]  %s396, 2048, %s398, %s385, 128, 128, 8
        $region52: #{tpu_custom_call.1} parent=47 // pred_fallthru
          _
        // Predicated region
        $region53: #{tpu_custom_call.1} parent=47 // pred_check
          %p404 = pneg %p96
        $region54: #{tpu_custom_call.1} parent=47 // pred_check_branch
          %406 = sbr.rel (%p404) target = $region56
        $region55: #{tpu_custom_call.1} parent=47 // pred_region
          %s407 = sand.u32 %s27, 1
          %s408 = scalar_lea.sflag [#allocation12], %s407
          %s409 = sand.u32 %s86, 1
          %s410 = smul.addr %s409, 128
          %s411 = scalar_lea.vmem [#allocation11], %s410
          %s412 = smul.u32 16, %s36
          %s414 = ssub.s32 2048, 2048
          %415 = vsyncadd %s408, %s414
          %s416 = smul.addr %s34, 32
          %s417 = sadd.s32 %s412, %s416
          %s418 = smul.addr %s417, 128
          %s419 = scalar_lea.hbm %s1, %s418
          %s420 = sshll.u32 %s411, 4
          %s421 = int_to_ptr.vmem [resolvable:$true] %s420
          %426 = dma.hbm_to_vmem [thread:$0]  %s419, 2048, %s421, %s408, 128, 128, 8
        $region56: #{tpu_custom_call.1} parent=47 // pred_fallthru
          _
      $region48: #{tpu_custom_call.1} parent=5 // pred_fallthru
        _
      %p427 = scmp.le.s32.totalorder 1, %s27
      %p428 = scmp.lt.s32.totalorder %s27, 9
      %p429 = pnand %p427, %p428
      %p430 = pneg %p429
      // Predicated region
      $region57: #{tpu_custom_call.1} parent=5 // pred_check
        _
      $region58: #{tpu_custom_call.1} parent=5 // pred_check_branch
        %432 = sbr.rel (%p429) target = $region60
      $region59: #{tpu_custom_call.1} parent=5 // pred_region
        %s433 = ssub.s32 %s27, 1
        %s434 = sand.u32 %s61, 1
        %s435 = scalar_lea.sflag [#allocation9], %s434
        %s436 = sand.u32 %s61, 1
        %s437 = smul.addr %s436, 128
        %s438 = scalar_lea.vmem [#allocation8], %s437
        // Predicated region
        $region61: #{tpu_custom_call.1} parent=59 // pred_check
          %p439 = pneg %p74
        $region62: #{tpu_custom_call.1} parent=59 // pred_check_branch
          %441 = sbr.rel (%p439) target = $region64
        $region63: #{tpu_custom_call.1} parent=59 // pred_region
          %442 = dma.done %s435, 2048
        $region64: #{tpu_custom_call.1} parent=59 // pred_fallthru
          _
        %s443 = sand.u32 %s32, 1
        %s444 = scalar_lea.sflag [#allocation12], %s443
        %s445 = sand.u32 %s89, 1
        %s446 = smul.addr %s445, 128
        %s447 = scalar_lea.vmem [#allocation11], %s446
        // Predicated region
        $region65: #{tpu_custom_call.1} parent=59 // pred_check
          %p448 = pneg %p102
        $region66: #{tpu_custom_call.1} parent=59 // pred_check_branch
          %450 = sbr.rel (%p448) target = $region68
        $region67: #{tpu_custom_call.1} parent=59 // pred_region
          %451 = dma.done %s444, 2048
        $region68: #{tpu_custom_call.1} parent=59 // pred_fallthru
          _
        // Predicated region
        $region69: #{tpu_custom_call.1} parent=59 // pred_check
          %p452 = pneg %p123
        $region70: #{tpu_custom_call.1} parent=59 // pred_check_branch
          %454 = sbr.rel (%p452) target = $region72
        $region71: #{tpu_custom_call.1} parent=59 // pred_region
          %455 = dma.done [#allocation12], 2048
        $region72: #{tpu_custom_call.1} parent=59 // pred_fallthru
          _
        // Predicated region
        $region73: #{tpu_custom_call.1} parent=59 // pred_check
          %p456 = pneg %p165
        $region74: #{tpu_custom_call.1} parent=59 // pred_check_branch
          %458 = sbr.rel (%p456) target = $region76
        $region75: #{tpu_custom_call.1} parent=59 // pred_region
          %459 = dma.done [#allocation15], 2048
        $region76: #{tpu_custom_call.1} parent=59 // pred_fallthru
          _
        // Predicated region
        $region77: #{tpu_custom_call.1} parent=59 // pred_check
          %p460 = pneg %p207
        $region78: #{tpu_custom_call.1} parent=59 // pred_check_branch
          %462 = sbr.rel (%p460) target = $region80
        $region79: #{tpu_custom_call.1} parent=59 // pred_region
          %463 = dma.done [#allocation15], 2048
        $region80: #{tpu_custom_call.1} parent=59 // pred_fallthru
          _
        // Predicated region
        $region81: #{tpu_custom_call.1} parent=59 // pred_check
          %p464 = pneg %p249
        $region82: #{tpu_custom_call.1} parent=59 // pred_check_branch
          %466 = sbr.rel (%p464) target = $region84
        $region83: #{tpu_custom_call.1} parent=59 // pred_region
          %467 = dma.done [#allocation18], 2048
        $region84: #{tpu_custom_call.1} parent=59 // pred_fallthru
          _
        %s468 = sand.u32 %s61, 1
        %s469 = scalar_lea.sflag [#allocation9], %s468
        %s470 = sand.u32 %s61, 1
        %s471 = smul.addr %s470, 128
        %s472 = scalar_lea.vmem [#allocation8], %s471
        %p473 = pneg %p74
        %p474 = pneg %p71
        %s475 = sand.u32 %s32, 1
        %s476 = scalar_lea.sflag [#allocation12], %s475
        %s477 = sand.u32 %s89, 1
        %s478 = smul.addr %s477, 128
        %s479 = scalar_lea.vmem [#allocation11], %s478
        %p480 = pneg %p102
        %p481 = pneg %p99
        %p482 = pneg %p123
        %p483 = pneg %p120
        %p484 = pneg %p144
        %p485 = pneg %p141
        %p486 = pneg %p165
        %p487 = pneg %p162
        %p488 = pneg %p186
        %p489 = pneg %p183
        %p490 = pneg %p207
        %p491 = pneg %p204
        %p492 = pneg %p228
        %p493 = pneg %p225
        %p494 = pneg %p249
        %p495 = pneg %p246
        %p496 = pneg %p270
        %p497 = pneg %p267
        %p498 = pneg %p298
        %p499 = pneg %p295
        %s500 = sand.u32 %s285, 1
        %s501 = scalar_lea.sflag [#allocation10], %s500
        %s502 = sand.u32 %s285, 1
        %s503 = smul.addr %s502, 128
        %s504 = scalar_lea.vmem [#allocation19], %s503
        %s505 = smul.u32 16, %s38
        %s506 = smul.u32 16, %s39
        %s507 = smul.u32 16, %s38
        %p508 = scmp.eq.s32.totalorder %s39, 0
        // Predicated region
        $region85: #{tpu_custom_call.1} parent=59 // pred_check
          %p509 = pneg %p508
        $region86: #{tpu_custom_call.1} parent=59 // pred_check_branch
          %511 = sbr.rel (%p509) target = $region88
        $region87: #{tpu_custom_call.1} parent=59 // pred_region
          %v512 = vld [vmem:[%s438] sm:$0xff]
          %v513 = vld [vmem:[%s438 + $0x8] sm:$0xff]
          %v514 = vld [vmem:[%s438 + $0x10] sm:$0xff]
          %v515 = vld [vmem:[%s438 + $0x18] sm:$0xff]
          %v516 = vld [vmem:[%s438 + $0x20] sm:$0xff]
          %v517 = vld [vmem:[%s438 + $0x28] sm:$0xff]
          %v518 = vld [vmem:[%s438 + $0x30] sm:$0xff]
          %v519 = vld [vmem:[%s438 + $0x38] sm:$0xff]
          %v520 = vld [vmem:[%s438 + $0x40] sm:$0xff]
          %v521 = vld [vmem:[%s438 + $0x48] sm:$0xff]
          %v522 = vld [vmem:[%s438 + $0x50] sm:$0xff]
          %v523 = vld [vmem:[%s438 + $0x58] sm:$0xff]
          %v524 = vld [vmem:[%s438 + $0x60] sm:$0xff]
          %v525 = vld [vmem:[%s438 + $0x68] sm:$0xff]
          %v526 = vld [vmem:[%s438 + $0x70] sm:$0xff]
          %v527 = vld [vmem:[%s438 + $0x78] sm:$0xff]
          %v528 = vld [vmem:[#allocation13] sm:$0xff]
          %v529 = vld [vmem:[#allocation13 + $0x8] sm:$0xff]
          %v530 = vld [vmem:[#allocation13 + $0x10] sm:$0xff]
          %v531 = vld [vmem:[#allocation13 + $0x18] sm:$0xff]
          %v532 = vld [vmem:[#allocation13 + $0x20] sm:$0xff]
          %v533 = vld [vmem:[#allocation13 + $0x28] sm:$0xff]
          %v534 = vld [vmem:[#allocation13 + $0x30] sm:$0xff]
          %v535 = vld [vmem:[#allocation13 + $0x38] sm:$0xff]
          %v536 = vld [vmem:[#allocation13 + $0x40] sm:$0xff]
          %v537 = vld [vmem:[#allocation13 + $0x48] sm:$0xff]
          %v538 = vld [vmem:[#allocation13 + $0x50] sm:$0xff]
          %v539 = vld [vmem:[#allocation13 + $0x58] sm:$0xff]
          %v540 = vld [vmem:[#allocation13 + $0x60] sm:$0xff]
          %v541 = vld [vmem:[#allocation13 + $0x68] sm:$0xff]
          %v542 = vld [vmem:[#allocation13 + $0x70] sm:$0xff]
          %v543 = vld [vmem:[#allocation13 + $0x78] sm:$0xff]
          %v544 = vld [vmem:[%s3] sm:$0x1]
          %v546 = vlaneseq
          %v547 = vshrl.u32 %v546, 7
          %v548 = vsub.s32 0, %v547
          %v549 = vrot.slane %v544, %v548
          %551 = vmatprep.subr.mxu0 0.0
          %552 = vmatpush1.msra.mxu0 %v528
          %553 = vmatprep.subr.mxu0 0.0
          %554 = vmatpush1.msra.mxu0 %v529
          %555 = vmatprep.subr.mxu0 0.0
          %556 = vmatpush1.msra.mxu0 %v530
          %557 = vmatprep.subr.mxu0 0.0
          %558 = vmatpush1.msra.mxu0 %v531
          %559 = vmatprep.subr.mxu0 0.0
          %560 = vmatpush1.msra.mxu0 %v532
          %561 = vmatprep.subr.mxu0 0.0
          %562 = vmatpush1.msra.mxu0 %v533
          %563 = vmatprep.subr.mxu0 0.0
          %564 = vmatpush1.msra.mxu0 %v534
          %565 = vmatprep.subr.mxu0 0.0
          %566 = vmatpush1.msra.mxu0 %v535
          %567 = vmatprep.subr.mxu0 0.0
          %568 = vmatpush1.msra.mxu0 %v536
          %569 = vmatprep.subr.mxu0 0.0
          %570 = vmatpush1.msra.mxu0 %v537
          %571 = vmatprep.subr.mxu0 0.0
          %572 = vmatpush1.msra.mxu0 %v538
          %573 = vmatprep.subr.mxu0 0.0
          %574 = vmatpush1.msra.mxu0 %v539
          %575 = vmatprep.subr.mxu0 0.0
          %576 = vmatpush1.msra.mxu0 %v540
          %577 = vmatprep.subr.mxu0 0.0
          %578 = vmatpush1.msra.mxu0 %v541
          %579 = vmatprep.subr.mxu0 0.0
          %580 = vmatpush1.msra.mxu0 %v542
          %581 = vmatprep.subr.mxu0 0.0
          %582 = vmatpush1.msra.mxu0 %v543
          %583 = vmatprep.subr.mxu0 0.0
          %584 = vmatpush1.msra.mxu0 0.0
          %585 = vmatprep.subr.mxu0 0.0
          %586 = vmatpush1.msra.mxu0 0.0
          %587 = vmatprep.subr.mxu0 0.0
          %588 = vmatpush1.msra.mxu0 0.0
          %589 = vmatprep.subr.mxu0 0.0
          %590 = vmatpush1.msra.mxu0 0.0
          %591 = vmatprep.subr.mxu0 0.0
          %592 = vmatpush1.msra.mxu0 0.0
          %593 = vmatprep.subr.mxu0 0.0
          %594 = vmatpush1.msra.mxu0 0.0
          %595 = vmatprep.subr.mxu0 0.0
          %596 = vmatpush1.msra.mxu0 0.0
          %597 = vmatprep.subr.mxu0 0.0
          %598 = vmatpush1.msra.mxu0 0.0
          %599 = vmatprep.subr.mxu0 0.0
          %600 = vmatpush1.msra.mxu0 0.0
          %601 = vmatprep.subr.mxu0 0.0
          %602 = vmatpush1.msra.mxu0 0.0
          %603 = vmatprep.subr.mxu0 0.0
          %604 = vmatpush1.msra.mxu0 0.0
          %605 = vmatprep.subr.mxu0 0.0
          %606 = vmatpush1.msra.mxu0 0.0
          %607 = vmatprep.subr.mxu0 0.0
          %608 = vmatpush1.msra.mxu0 0.0
          %609 = vmatprep.subr.mxu0 0.0
          %610 = vmatpush1.msra.mxu0 0.0
          %611 = vmatprep.subr.mxu0 0.0
          %612 = vmatpush1.msra.mxu0 0.0
          %613 = vmatprep.subr.mxu0 0.0
          %614 = vmatpush1.msra.mxu0 0.0
          %615 = vmatprep.mubr.f32.mxu0 0.0
          %616 = vmatmul.mubr.f32.gmra.mrb[0].mxu0 %v512
          %v617 = vpop.f32.mrb[0].mxu0
          %v618 = vadd.f32 %v549, %v617
          %v619 = vpop.f32.mrb[0].mxu0
          %620 = vmatprep.mubr.f32.mxu0 0.0
          %621 = vmatmul.mubr.f32.gmra.mrb[0].mxu0 %v513
          %v622 = vpop.f32.mrb[0].mxu0
          %v623 = vadd.f32 %v549, %v622
          %v624 = vpop.f32.mrb[0].mxu0
          %625 = vmatprep.mubr.f32.mxu0 0.0
          %626 = vmatmul.mubr.f32.gmra.mrb[0].mxu0 %v514
          %v627 = vpop.f32.mrb[0].mxu0
          %v628 = vadd.f32 %v549, %v627
          %v629 = vpop.f32.mrb[0].mxu0
          %630 = vmatprep.mubr.f32.mxu0 0.0
          %631 = vmatmul.mubr.f32.gmra.mrb[0].mxu0 %v515
          %v632 = vpop.f32.mrb[0].mxu0
          %v633 = vadd.f32 %v549, %v632
          %v634 = vpop.f32.mrb[0].mxu0
          %635 = vmatprep.mubr.f32.mxu0 0.0
          %636 = vmatmul.mubr.f32.gmra.mrb[0].mxu0 %v516
          %v637 = vpop.f32.mrb[0].mxu0
          %v638 = vadd.f32 %v549, %v637
          %v639 = vpop.f32.mrb[0].mxu0
          %640 = vmatprep.mubr.f32.mxu0 0.0
          %641 = vmatmul.mubr.f32.gmra.mrb[0].mxu0 %v517
          %v642 = vpop.f32.mrb[0].mxu0
          %v643 = vadd.f32 %v549, %v642
          %v644 = vpop.f32.mrb[0].mxu0
          %645 = vmatprep.mubr.f32.mxu0 0.0
          %646 = vmatmul.mubr.f32.gmra.mrb[0].mxu0 %v518
          %v647 = vpop.f32.mrb[0].mxu0
          %v648 = vadd.f32 %v549, %v647
          %v649 = vpop.f32.mrb[0].mxu0
          %650 = vmatprep.mubr.f32.mxu0 0.0
          %651 = vmatmul.mubr.f32.gmra.mrb[0].mxu0 %v519
          %v652 = vpop.f32.mrb[0].mxu0
          %v653 = vadd.f32 %v549, %v652
          %v654 = vpop.f32.mrb[0].mxu0
          %655 = vmatprep.mubr.f32.mxu0 0.0
          %656 = vmatmul.mubr.f32.gmra.mrb[0].mxu0 %v520
          %v657 = vpop.f32.mrb[0].mxu0
          %v658 = vadd.f32 %v549, %v657
          %v659 = vpop.f32.mrb[0].mxu0
          %660 = vmatprep.mubr.f32.mxu0 0.0
          %661 = vmatmul.mubr.f32.gmra.mrb[0].mxu0 %v521
          %v662 = vpop.f32.mrb[0].mxu0
          %v663 = vadd.f32 %v549, %v662
          %v664 = vpop.f32.mrb[0].mxu0
          %665 = vmatprep.mubr.f32.mxu0 0.0
          %666 = vmatmul.mubr.f32.gmra.mrb[0].mxu0 %v522
          %v667 = vpop.f32.mrb[0].mxu0
          %v668 = vadd.f32 %v549, %v667
          %v669 = vpop.f32.mrb[0].mxu0
          %670 = vmatprep.mubr.f32.mxu0 0.0
          %671 = vmatmul.mubr.f32.gmra.mrb[0].mxu0 %v523
          %v672 = vpop.f32.mrb[0].mxu0
          %v673 = vadd.f32 %v549, %v672
          %v674 = vpop.f32.mrb[0].mxu0
          %675 = vmatprep.mubr.f32.mxu0 0.0
          %676 = vmatmul.mubr.f32.gmra.mrb[0].mxu0 %v524
          %v677 = vpop.f32.mrb[0].mxu0
          %v678 = vadd.f32 %v549, %v677
          %v679 = vpop.f32.mrb[0].mxu0
          %680 = vmatprep.mubr.f32.mxu0 0.0
          %681 = vmatmul.mubr.f32.gmra.mrb[0].mxu0 %v525
          %v682 = vpop.f32.mrb[0].mxu0
          %v683 = vadd.f32 %v549, %v682
          %v684 = vpop.f32.mrb[0].mxu0
          %685 = vmatprep.mubr.f32.mxu0 0.0
          %686 = vmatmul.mubr.f32.gmra.mrb[0].mxu0 %v526
          %v687 = vpop.f32.mrb[0].mxu0
          %v688 = vadd.f32 %v549, %v687
          %v689 = vpop.f32.mrb[0].mxu0
          %690 = vmatprep.mubr.f32.mxu0 0.0
          %691 = vmatmul.mubr.f32.gmra.mrb[0].mxu0 %v527
          %v692 = vpop.f32.mrb[0].mxu0
          %v693 = vadd.f32 %v549, %v692
          %v694 = vpop.f32.mrb[0].mxu0
          %695 = vdwg.mxu0
          %v696 = vmul.f32 %v618, 0.088388346
          %v697 = vmul.f32 %v623, 0.088388346
          %v698 = vmul.f32 %v628, 0.088388346
          %v699 = vmul.f32 %v633, 0.088388346
          %v700 = vmul.f32 %v638, 0.088388346
          %v701 = vmul.f32 %v643, 0.088388346
          %v702 = vmul.f32 %v648, 0.088388346
          %v703 = vmul.f32 %v653, 0.088388346
          %v704 = vmul.f32 %v658, 0.088388346
          %v705 = vmul.f32 %v663, 0.088388346
          %v706 = vmul.f32 %v668, 0.088388346
          %v707 = vmul.f32 %v673, 0.088388346
          %v708 = vmul.f32 %v678, 0.088388346
          %v709 = vmul.f32 %v683, 0.088388346
          %v710 = vmul.f32 %v688, 0.088388346
          %v711 = vmul.f32 %v693, 0.088388346
          %712 = vst [vmem:[#allocation2] sm:$0xff] %v696
          %713 = vst [vmem:[#allocation2 + $0x8] sm:$0xff] %v697
          %714 = vst [vmem:[#allocation2 + $0x10] sm:$0xff] %v698
          %715 = vst [vmem:[#allocation2 + $0x18] sm:$0xff] %v699
          %716 = vst [vmem:[#allocation2 + $0x20] sm:$0xff] %v700
          %717 = vst [vmem:[#allocation2 + $0x28] sm:$0xff] %v701
          %718 = vst [vmem:[#allocation2 + $0x30] sm:$0xff] %v702
          %719 = vst [vmem:[#allocation2 + $0x38] sm:$0xff] %v703
          %720 = vst [vmem:[#allocation2 + $0x40] sm:$0xff] %v704
          %721 = vst [vmem:[#allocation2 + $0x48] sm:$0xff] %v705
          %722 = vst [vmem:[#allocation2 + $0x50] sm:$0xff] %v706
          %723 = vst [vmem:[#allocation2 + $0x58] sm:$0xff] %v707
          %724 = vst [vmem:[#allocation2 + $0x60] sm:$0xff] %v708
          %725 = vst [vmem:[#allocation2 + $0x68] sm:$0xff] %v709
          %726 = vst [vmem:[#allocation2 + $0x70] sm:$0xff] %v710
          %727 = vst [vmem:[#allocation2 + $0x78] sm:$0xff] %v711
          %vm728 = vcmask 7168
          %729 = vst.msk [vmem:[#allocation3] sm:$0xff] %vm728, -inf
          %730 = vst.msk [vmem:[#allocation3 + $0x8] sm:$0xff] %vm728, -inf
          %731 = vst.msk [vmem:[#allocation3 + $0x10] sm:$0xff] %vm728, -inf
          %732 = vst.msk [vmem:[#allocation3 + $0x18] sm:$0xff] %vm728, -inf
          %733 = vst.msk [vmem:[#allocation3 + $0x20] sm:$0xff] %vm728, -inf
          %734 = vst.msk [vmem:[#allocation3 + $0x28] sm:$0xff] %vm728, -inf
          %735 = vst.msk [vmem:[#allocation3 + $0x30] sm:$0xff] %vm728, -inf
          %736 = vst.msk [vmem:[#allocation3 + $0x38] sm:$0xff] %vm728, -inf
          %737 = vst.msk [vmem:[#allocation3 + $0x40] sm:$0xff] %vm728, -inf
          %738 = vst.msk [vmem:[#allocation3 + $0x48] sm:$0xff] %vm728, -inf
          %739 = vst.msk [vmem:[#allocation3 + $0x50] sm:$0xff] %vm728, -inf
          %740 = vst.msk [vmem:[#allocation3 + $0x58] sm:$0xff] %vm728, -inf
          %741 = vst.msk [vmem:[#allocation3 + $0x60] sm:$0xff] %vm728, -inf
          %742 = vst.msk [vmem:[#allocation3 + $0x68] sm:$0xff] %vm728, -inf
          %743 = vst.msk [vmem:[#allocation3 + $0x70] sm:$0xff] %vm728, -inf
          %744 = vst.msk [vmem:[#allocation3 + $0x78] sm:$0xff] %vm728, -inf
          %745 = vst.msk [vmem:[#allocation4] sm:$0xff] %vm728, 0.0
          %746 = vst.msk [vmem:[#allocation4 + $0x8] sm:$0xff] %vm728, 0.0
          %747 = vst.msk [vmem:[#allocation4 + $0x10] sm:$0xff] %vm728, 0.0
          %748 = vst.msk [vmem:[#allocation4 + $0x18] sm:$0xff] %vm728, 0.0
          %749 = vst.msk [vmem:[#allocation4 + $0x20] sm:$0xff] %vm728, 0.0
          %750 = vst.msk [vmem:[#allocation4 + $0x28] sm:$0xff] %vm728, 0.0
          %751 = vst.msk [vmem:[#allocation4 + $0x30] sm:$0xff] %vm728, 0.0
          %752 = vst.msk [vmem:[#allocation4 + $0x38] sm:$0xff] %vm728, 0.0
          %753 = vst.msk [vmem:[#allocation4 + $0x40] sm:$0xff] %vm728, 0.0
          %754 = vst.msk [vmem:[#allocation4 + $0x48] sm:$0xff] %vm728, 0.0
          %755 = vst.msk [vmem:[#allocation4 + $0x50] sm:$0xff] %vm728, 0.0
          %756 = vst.msk [vmem:[#allocation4 + $0x58] sm:$0xff] %vm728, 0.0
          %757 = vst.msk [vmem:[#allocation4 + $0x60] sm:$0xff] %vm728, 0.0
          %758 = vst.msk [vmem:[#allocation4 + $0x68] sm:$0xff] %vm728, 0.0
          %759 = vst.msk [vmem:[#allocation4 + $0x70] sm:$0xff] %vm728, 0.0
          %760 = vst.msk [vmem:[#allocation4 + $0x78] sm:$0xff] %vm728, 0.0
          %761 = vst [vmem:[#allocation5] sm:$0xff] 0.0
          %762 = vst [vmem:[#allocation5 + $0x8] sm:$0xff] 0.0
          %763 = vst [vmem:[#allocation5 + $0x10] sm:$0xff] 0.0
          %764 = vst [vmem:[#allocation5 + $0x18] sm:$0xff] 0.0
          %765 = vst [vmem:[#allocation5 + $0x20] sm:$0xff] 0.0
          %766 = vst [vmem:[#allocation5 + $0x28] sm:$0xff] 0.0
          %767 = vst [vmem:[#allocation5 + $0x30] sm:$0xff] 0.0
          %768 = vst [vmem:[#allocation5 + $0x38] sm:$0xff] 0.0
          %769 = vst [vmem:[#allocation5 + $0x40] sm:$0xff] 0.0
          %770 = vst [vmem:[#allocation5 + $0x48] sm:$0xff] 0.0
          %771 = vst [vmem:[#allocation5 + $0x50] sm:$0xff] 0.0
          %772 = vst [vmem:[#allocation5 + $0x58] sm:$0xff] 0.0
          %773 = vst [vmem:[#allocation5 + $0x60] sm:$0xff] 0.0
          %774 = vst [vmem:[#allocation5 + $0x68] sm:$0xff] 0.0
          %775 = vst [vmem:[#allocation5 + $0x70] sm:$0xff] 0.0
          %776 = vst [vmem:[#allocation5 + $0x78] sm:$0xff] 0.0
        $region88: #{tpu_custom_call.1} parent=59 // pred_fallthru
          _
        %s777 = smul.u32 %s39, 128
        %p778 = scmp.eq.s32.totalorder %s38, 0
        // Predicated region
        $region89: #{tpu_custom_call.1} parent=59 // pred_check
          %p779 = pneg %p778
        $region90: #{tpu_custom_call.1} parent=59 // pred_check_branch
          %781 = sbr.rel (%p779) target = $region92
        $region91: #{tpu_custom_call.1} parent=59 // pred_region
          %v782 = vld [vmem:[%s447] sm:$0xff]
          %v783 = vld [vmem:[%s447 + $0x8] sm:$0xff]
          %v784 = vld [vmem:[%s447 + $0x10] sm:$0xff]
          %v785 = vld [vmem:[%s447 + $0x18] sm:$0xff]
          %v786 = vld [vmem:[%s447 + $0x20] sm:$0xff]
          %v787 = vld [vmem:[%s447 + $0x28] sm:$0xff]
          %v788 = vld [vmem:[%s447 + $0x30] sm:$0xff]
          %v789 = vld [vmem:[%s447 + $0x38] sm:$0xff]
          %v790 = vld [vmem:[%s447 + $0x40] sm:$0xff]
          %v791 = vld [vmem:[%s447 + $0x48] sm:$0xff]
          %v792 = vld [vmem:[%s447 + $0x50] sm:$0xff]
          %v793 = vld [vmem:[%s447 + $0x58] sm:$0xff]
          %v794 = vld [vmem:[%s447 + $0x60] sm:$0xff]
          %v795 = vld [vmem:[%s447 + $0x68] sm:$0xff]
          %v796 = vld [vmem:[%s447 + $0x70] sm:$0xff]
          %v797 = vld [vmem:[%s447 + $0x78] sm:$0xff]
          %v798 = vld [vmem:[#allocation14] sm:$0xff]
          %v799 = vld [vmem:[#allocation14 + $0x8] sm:$0xff]
          %v800 = vld [vmem:[#allocation14 + $0x10] sm:$0xff]
          %v801 = vld [vmem:[#allocation14 + $0x18] sm:$0xff]
          %v802 = vld [vmem:[#allocation14 + $0x20] sm:$0xff]
          %v803 = vld [vmem:[#allocation14 + $0x28] sm:$0xff]
          %v804 = vld [vmem:[#allocation14 + $0x30] sm:$0xff]
          %v805 = vld [vmem:[#allocation14 + $0x38] sm:$0xff]
          %v806 = vld [vmem:[#allocation14 + $0x40] sm:$0xff]
          %v807 = vld [vmem:[#allocation14 + $0x48] sm:$0xff]
          %v808 = vld [vmem:[#allocation14 + $0x50] sm:$0xff]
          %v809 = vld [vmem:[#allocation14 + $0x58] sm:$0xff]
          %v810 = vld [vmem:[#allocation14 + $0x60] sm:$0xff]
          %v811 = vld [vmem:[#allocation14 + $0x68] sm:$0xff]
          %v812 = vld [vmem:[#allocation14 + $0x70] sm:$0xff]
          %v813 = vld [vmem:[#allocation14 + $0x78] sm:$0xff]
          %v814 = vld [vmem:[%s5] sm:$0x1]
          %v816 = vlaneseq
          %v817 = vshrl.u32 %v816, 7
          %v818 = vsub.s32 0, %v817
          %v819 = vrot.slane %v814, %v818
          %821 = vmatprep.subr.mxu0 0.0
          %822 = vmatpush1.msra.mxu0 %v798
          %823 = vmatprep.subr.mxu0 0.0
          %824 = vmatpush1.msra.mxu0 %v799
          %825 = vmatprep.subr.mxu0 0.0
          %826 = vmatpush1.msra.mxu0 %v800
          %827 = vmatprep.subr.mxu0 0.0
          %828 = vmatpush1.msra.mxu0 %v801
          %829 = vmatprep.subr.mxu0 0.0
          %830 = vmatpush1.msra.mxu0 %v802
          %831 = vmatprep.subr.mxu0 0.0
          %832 = vmatpush1.msra.mxu0 %v803
          %833 = vmatprep.subr.mxu0 0.0
          %834 = vmatpush1.msra.mxu0 %v804
          %835 = vmatprep.subr.mxu0 0.0
          %836 = vmatpush1.msra.mxu0 %v805
          %837 = vmatprep.subr.mxu0 0.0
          %838 = vmatpush1.msra.mxu0 %v806
          %839 = vmatprep.subr.mxu0 0.0
          %840 = vmatpush1.msra.mxu0 %v807
          %841 = vmatprep.subr.mxu0 0.0
          %842 = vmatpush1.msra.mxu0 %v808
          %843 = vmatprep.subr.mxu0 0.0
          %844 = vmatpush1.msra.mxu0 %v809
          %845 = vmatprep.subr.mxu0 0.0
          %846 = vmatpush1.msra.mxu0 %v810
          %847 = vmatprep.subr.mxu0 0.0
          %848 = vmatpush1.msra.mxu0 %v811
          %849 = vmatprep.subr.mxu0 0.0
          %850 = vmatpush1.msra.mxu0 %v812
          %851 = vmatprep.subr.mxu0 0.0
          %852 = vmatpush1.msra.mxu0 %v813
          %853 = vmatprep.subr.mxu0 0.0
          %854 = vmatpush1.msra.mxu0 0.0
          %855 = vmatprep.subr.mxu0 0.0
          %856 = vmatpush1.msra.mxu0 0.0
          %857 = vmatprep.subr.mxu0 0.0
          %858 = vmatpush1.msra.mxu0 0.0
          %859 = vmatprep.subr.mxu0 0.0
          %860 = vmatpush1.msra.mxu0 0.0
          %861 = vmatprep.subr.mxu0 0.0
          %862 = vmatpush1.msra.mxu0 0.0
          %863 = vmatprep.subr.mxu0 0.0
          %864 = vmatpush1.msra.mxu0 0.0
          %865 = vmatprep.subr.mxu0 0.0
          %866 = vmatpush1.msra.mxu0 0.0
          %867 = vmatprep.subr.mxu0 0.0
          %868 = vmatpush1.msra.mxu0 0.0
          %869 = vmatprep.subr.mxu0 0.0
          %870 = vmatpush1.msra.mxu0 0.0
          %871 = vmatprep.subr.mxu0 0.0
          %872 = vmatpush1.msra.mxu0 0.0
          %873 = vmatprep.subr.mxu0 0.0
          %874 = vmatpush1.msra.mxu0 0.0
          %875 = vmatprep.subr.mxu0 0.0
          %876 = vmatpush1.msra.mxu0 0.0
          %877 = vmatprep.subr.mxu0 0.0
          %878 = vmatpush1.msra.mxu0 0.0
          %879 = vmatprep.subr.mxu0 0.0
          %880 = vmatpush1.msra.mxu0 0.0
          %881 = vmatprep.subr.mxu0 0.0
          %882 = vmatpush1.msra.mxu0 0.0
          %883 = vmatprep.subr.mxu0 0.0
          %884 = vmatpush1.msra.mxu0 0.0
          %885 = vmatprep.mubr.f32.mxu0 0.0
          %886 = vmatmul.mubr.f32.gmra.mrb[0].mxu0 %v782
          %v887 = vpop.f32.mrb[0].mxu0
          %v888 = vadd.f32 %v819, %v887
          %v889 = vpop.f32.mrb[0].mxu0
          %890 = vmatprep.mubr.f32.mxu0 0.0
          %891 = vmatmul.mubr.f32.gmra.mrb[0].mxu0 %v783
          %v892 = vpop.f32.mrb[0].mxu0
          %v893 = vadd.f32 %v819, %v892
          %v894 = vpop.f32.mrb[0].mxu0
          %895 = vmatprep.mubr.f32.mxu0 0.0
          %896 = vmatmul.mubr.f32.gmra.mrb[0].mxu0 %v784
          %v897 = vpop.f32.mrb[0].mxu0
          %v898 = vadd.f32 %v819, %v897
          %v899 = vpop.f32.mrb[0].mxu0
          %900 = vmatprep.mubr.f32.mxu0 0.0
          %901 = vmatmul.mubr.f32.gmra.mrb[0].mxu0 %v785
          %v902 = vpop.f32.mrb[0].mxu0
          %v903 = vadd.f32 %v819, %v902
          %v904 = vpop.f32.mrb[0].mxu0
          %905 = vmatprep.mubr.f32.mxu0 0.0
          %906 = vmatmul.mubr.f32.gmra.mrb[0].mxu0 %v786
          %v907 = vpop.f32.mrb[0].mxu0
          %v908 = vadd.f32 %v819, %v907
          %v909 = vpop.f32.mrb[0].mxu0
          %910 = vmatprep.mubr.f32.mxu0 0.0
          %911 = vmatmul.mubr.f32.gmra.mrb[0].mxu0 %v787
          %v912 = vpop.f32.mrb[0].mxu0
          %v913 = vadd.f32 %v819, %v912
          %v914 = vpop.f32.mrb[0].mxu0
          %915 = vmatprep.mubr.f32.mxu0 0.0
          %916 = vmatmul.mubr.f32.gmra.mrb[0].mxu0 %v788
          %v917 = vpop.f32.mrb[0].mxu0
          %v918 = vadd.f32 %v819, %v917
          %v919 = vpop.f32.mrb[0].mxu0
          %920 = vmatprep.mubr.f32.mxu0 0.0
          %921 = vmatmul.mubr.f32.gmra.mrb[0].mxu0 %v789
          %v922 = vpop.f32.mrb[0].mxu0
          %v923 = vadd.f32 %v819, %v922
          %v924 = vpop.f32.mrb[0].mxu0
          %925 = vmatprep.mubr.f32.mxu0 0.0
          %926 = vmatmul.mubr.f32.gmra.mrb[0].mxu0 %v790
          %v927 = vpop.f32.mrb[0].mxu0
          %v928 = vadd.f32 %v819, %v927
          %v929 = vpop.f32.mrb[0].mxu0
          %930 = vmatprep.mubr.f32.mxu0 0.0
          %931 = vmatmul.mubr.f32.gmra.mrb[0].mxu0 %v791
          %v932 = vpop.f32.mrb[0].mxu0
          %v933 = vadd.f32 %v819, %v932
          %v934 = vpop.f32.mrb[0].mxu0
          %935 = vmatprep.mubr.f32.mxu0 0.0
          %936 = vmatmul.mubr.f32.gmra.mrb[0].mxu0 %v792
          %v937 = vpop.f32.mrb[0].mxu0
          %v938 = vadd.f32 %v819, %v937
          %v939 = vpop.f32.mrb[0].mxu0
          %940 = vmatprep.mubr.f32.mxu0 0.0
          %941 = vmatmul.mubr.f32.gmra.mrb[0].mxu0 %v793
          %v942 = vpop.f32.mrb[0].mxu0
          %v943 = vadd.f32 %v819, %v942
          %v944 = vpop.f32.mrb[0].mxu0
          %945 = vmatprep.mubr.f32.mxu0 0.0
          %946 = vmatmul.mubr.f32.gmra.mrb[0].mxu0 %v794
          %v947 = vpop.f32.mrb[0].mxu0
          %v948 = vadd.f32 %v819, %v947
          %v949 = vpop.f32.mrb[0].mxu0
          %950 = vmatprep.mubr.f32.mxu0 0.0
          %951 = vmatmul.mubr.f32.gmra.mrb[0].mxu0 %v795
          %v952 = vpop.f32.mrb[0].mxu0
          %v953 = vadd.f32 %v819, %v952
          %v954 = vpop.f32.mrb[0].mxu0
          %955 = vmatprep.mubr.f32.mxu0 0.0
          %956 = vmatmul.mubr.f32.gmra.mrb[0].mxu0 %v796
          %v957 = vpop.f32.mrb[0].mxu0
          %v958 = vadd.f32 %v819, %v957
          %v959 = vpop.f32.mrb[0].mxu0
          %960 = vmatprep.mubr.f32.mxu0 0.0
          %961 = vmatmul.mubr.f32.gmra.mrb[0].mxu0 %v797
          %v962 = vpop.f32.mrb[0].mxu0
          %v963 = vadd.f32 %v819, %v962
          %v964 = vpop.f32.mrb[0].mxu0
          %965 = vdwg.mxu0
          %v966 = vld [vmem:[#allocation16] sm:$0xff]
          %v967 = vld [vmem:[#allocation16 + $0x8] sm:$0xff]
          %v968 = vld [vmem:[#allocation16 + $0x10] sm:$0xff]
          %v969 = vld [vmem:[#allocation16 + $0x18] sm:$0xff]
          %v970 = vld [vmem:[#allocation16 + $0x20] sm:$0xff]
          %v971 = vld [vmem:[#allocation16 + $0x28] sm:$0xff]
          %v972 = vld [vmem:[#allocation16 + $0x30] sm:$0xff]
          %v973 = vld [vmem:[#allocation16 + $0x38] sm:$0xff]
          %v974 = vld [vmem:[#allocation16 + $0x40] sm:$0xff]
          %v975 = vld [vmem:[#allocation16 + $0x48] sm:$0xff]
          %v976 = vld [vmem:[#allocation16 + $0x50] sm:$0xff]
          %v977 = vld [vmem:[#allocation16 + $0x58] sm:$0xff]
          %v978 = vld [vmem:[#allocation16 + $0x60] sm:$0xff]
          %v979 = vld [vmem:[#allocation16 + $0x68] sm:$0xff]
          %v980 = vld [vmem:[#allocation16 + $0x70] sm:$0xff]
          %v981 = vld [vmem:[#allocation16 + $0x78] sm:$0xff]
          %v982 = vld [vmem:[%s7] sm:$0x1]
          %v984 = vlaneseq
          %v985 = vshrl.u32 %v984, 7
          %v986 = vsub.s32 0, %v985
          %v987 = vrot.slane %v982, %v986
          %989 = vmatprep.subr.mxu0 0.0
          %990 = vmatpush1.msra.mxu0 %v966
          %991 = vmatprep.subr.mxu0 0.0
          %992 = vmatpush1.msra.mxu0 %v967
          %993 = vmatprep.subr.mxu0 0.0
          %994 = vmatpush1.msra.mxu0 %v968
          %995 = vmatprep.subr.mxu0 0.0
          %996 = vmatpush1.msra.mxu0 %v969
          %997 = vmatprep.subr.mxu0 0.0
          %998 = vmatpush1.msra.mxu0 %v970
          %999 = vmatprep.subr.mxu0 0.0
          %1000 = vmatpush1.msra.mxu0 %v971
          %1001 = vmatprep.subr.mxu0 0.0
          %1002 = vmatpush1.msra.mxu0 %v972
          %1003 = vmatprep.subr.mxu0 0.0
          %1004 = vmatpush1.msra.mxu0 %v973
          %1005 = vmatprep.subr.mxu0 0.0
          %1006 = vmatpush1.msra.mxu0 %v974
          %1007 = vmatprep.subr.mxu0 0.0
          %1008 = vmatpush1.msra.mxu0 %v975
          %1009 = vmatprep.subr.mxu0 0.0
          %1010 = vmatpush1.msra.mxu0 %v976
          %1011 = vmatprep.subr.mxu0 0.0
          %1012 = vmatpush1.msra.mxu0 %v977
          %1013 = vmatprep.subr.mxu0 0.0
          %1014 = vmatpush1.msra.mxu0 %v978
          %1015 = vmatprep.subr.mxu0 0.0
          %1016 = vmatpush1.msra.mxu0 %v979
          %1017 = vmatprep.subr.mxu0 0.0
          %1018 = vmatpush1.msra.mxu0 %v980
          %1019 = vmatprep.subr.mxu0 0.0
          %1020 = vmatpush1.msra.mxu0 %v981
          %1021 = vmatprep.subr.mxu0 0.0
          %1022 = vmatpush1.msra.mxu0 0.0
          %1023 = vmatprep.subr.mxu0 0.0
          %1024 = vmatpush1.msra.mxu0 0.0
          %1025 = vmatprep.subr.mxu0 0.0
          %1026 = vmatpush1.msra.mxu0 0.0
          %1027 = vmatprep.subr.mxu0 0.0
          %1028 = vmatpush1.msra.mxu0 0.0
          %1029 = vmatprep.subr.mxu0 0.0
          %1030 = vmatpush1.msra.mxu0 0.0
          %1031 = vmatprep.subr.mxu0 0.0
          %1032 = vmatpush1.msra.mxu0 0.0
          %1033 = vmatprep.subr.mxu0 0.0
          %1034 = vmatpush1.msra.mxu0 0.0
          %1035 = vmatprep.subr.mxu0 0.0
          %1036 = vmatpush1.msra.mxu0 0.0
          %1037 = vmatprep.subr.mxu0 0.0
          %1038 = vmatpush1.msra.mxu0 0.0
          %1039 = vmatprep.subr.mxu0 0.0
          %1040 = vmatpush1.msra.mxu0 0.0
          %1041 = vmatprep.subr.mxu0 0.0
          %1042 = vmatpush1.msra.mxu0 0.0
          %1043 = vmatprep.subr.mxu0 0.0
          %1044 = vmatpush1.msra.mxu0 0.0
          %1045 = vmatprep.subr.mxu0 0.0
          %1046 = vmatpush1.msra.mxu0 0.0
          %1047 = vmatprep.subr.mxu0 0.0
          %1048 = vmatpush1.msra.mxu0 0.0
          %1049 = vmatprep.subr.mxu0 0.0
          %1050 = vmatpush1.msra.mxu0 0.0
          %1051 = vmatprep.subr.mxu0 0.0
          %1052 = vmatpush1.msra.mxu0 0.0
          %1053 = vmatprep.mubr.f32.mxu0 0.0
          %1054 = vmatmul.mubr.f32.gmra.mrb[0].mxu0 %v782
          %v1055 = vpop.f32.mrb[0].mxu0
          %v1056 = vadd.f32 %v987, %v1055
          %v1057 = vpop.f32.mrb[0].mxu0
          %1058 = vmatprep.mubr.f32.mxu0 0.0
          %1059 = vmatmul.mubr.f32.gmra.mrb[0].mxu0 %v783
          %v1060 = vpop.f32.mrb[0].mxu0
          %v1061 = vadd.f32 %v987, %v1060
          %v1062 = vpop.f32.mrb[0].mxu0
          %1063 = vmatprep.mubr.f32.mxu0 0.0
          %1064 = vmatmul.mubr.f32.gmra.mrb[0].mxu0 %v784
          %v1065 = vpop.f32.mrb[0].mxu0
          %v1066 = vadd.f32 %v987, %v1065
          %v1067 = vpop.f32.mrb[0].mxu0
          %1068 = vmatprep.mubr.f32.mxu0 0.0
          %1069 = vmatmul.mubr.f32.gmra.mrb[0].mxu0 %v785
          %v1070 = vpop.f32.mrb[0].mxu0
          %v1071 = vadd.f32 %v987, %v1070
          %v1072 = vpop.f32.mrb[0].mxu0
          %1073 = vmatprep.mubr.f32.mxu0 0.0
          %1074 = vmatmul.mubr.f32.gmra.mrb[0].mxu0 %v786
          %v1075 = vpop.f32.mrb[0].mxu0
          %v1076 = vadd.f32 %v987, %v1075
          %v1077 = vpop.f32.mrb[0].mxu0
          %1078 = vmatprep.mubr.f32.mxu0 0.0
          %1079 = vmatmul.mubr.f32.gmra.mrb[0].mxu0 %v787
          %v1080 = vpop.f32.mrb[0].mxu0
          %v1081 = vadd.f32 %v987, %v1080
          %v1082 = vpop.f32.mrb[0].mxu0
          %1083 = vmatprep.mubr.f32.mxu0 0.0
          %1084 = vmatmul.mubr.f32.gmra.mrb[0].mxu0 %v788
          %v1085 = vpop.f32.mrb[0].mxu0
          %v1086 = vadd.f32 %v987, %v1085
          %v1087 = vpop.f32.mrb[0].mxu0
          %1088 = vmatprep.mubr.f32.mxu0 0.0
          %1089 = vmatmul.mubr.f32.gmra.mrb[0].mxu0 %v789
          %v1090 = vpop.f32.mrb[0].mxu0
          %v1091 = vadd.f32 %v987, %v1090
          %v1092 = vpop.f32.mrb[0].mxu0
          %1093 = vmatprep.mubr.f32.mxu0 0.0
          %1094 = vmatmul.mubr.f32.gmra.mrb[0].mxu0 %v790
          %v1095 = vpop.f32.mrb[0].mxu0
          %v1096 = vadd.f32 %v987, %v1095
          %v1097 = vpop.f32.mrb[0].mxu0
          %1098 = vmatprep.mubr.f32.mxu0 0.0
          %1099 = vmatmul.mubr.f32.gmra.mrb[0].mxu0 %v791
          %v1100 = vpop.f32.mrb[0].mxu0
          %v1101 = vadd.f32 %v987, %v1100
          %v1102 = vpop.f32.mrb[0].mxu0
          %1103 = vmatprep.mubr.f32.mxu0 0.0
          %1104 = vmatmul.mubr.f32.gmra.mrb[0].mxu0 %v792
          %v1105 = vpop.f32.mrb[0].mxu0
          %v1106 = vadd.f32 %v987, %v1105
          %v1107 = vpop.f32.mrb[0].mxu0
          %1108 = vmatprep.mubr.f32.mxu0 0.0
          %1109 = vmatmul.mubr.f32.gmra.mrb[0].mxu0 %v793
          %v1110 = vpop.f32.mrb[0].mxu0
          %v1111 = vadd.f32 %v987, %v1110
          %v1112 = vpop.f32.mrb[0].mxu0
          %1113 = vmatprep.mubr.f32.mxu0 0.0
          %1114 = vmatmul.mubr.f32.gmra.mrb[0].mxu0 %v794
          %v1115 = vpop.f32.mrb[0].mxu0
          %v1116 = vadd.f32 %v987, %v1115
          %v1117 = vpop.f32.mrb[0].mxu0
          %1118 = vmatprep.mubr.f32.mxu0 0.0
          %1119 = vmatmul.mubr.f32.gmra.mrb[0].mxu0 %v795
          %v1120 = vpop.f32.mrb[0].mxu0
          %v1121 = vadd.f32 %v987, %v1120
          %v1122 = vpop.f32.mrb[0].mxu0
          %1123 = vmatprep.mubr.f32.mxu0 0.0
          %1124 = vmatmul.mubr.f32.gmra.mrb[0].mxu0 %v796
          %v1125 = vpop.f32.mrb[0].mxu0
          %v1126 = vadd.f32 %v987, %v1125
          %v1127 = vpop.f32.mrb[0].mxu0
          %1128 = vmatprep.mubr.f32.mxu0 0.0
          %1129 = vmatmul.mubr.f32.gmra.mrb[0].mxu0 %v797
          %v1130 = vpop.f32.mrb[0].mxu0
          %v1131 = vadd.f32 %v987, %v1130
          %v1132 = vpop.f32.mrb[0].mxu0
          %1133 = vdwg.mxu0
          %s1134 = scalar_lea.vmem [#allocation6], %s777
          %1135 = vst [vmem:[%s1134] sm:$0xff] %v888
          %1136 = vst [vmem:[%s1134 + $0x8] sm:$0xff] %v893
          %1137 = vst [vmem:[%s1134 + $0x10] sm:$0xff] %v898
          %1138 = vst [vmem:[%s1134 + $0x18] sm:$0xff] %v903
          %1139 = vst [vmem:[%s1134 + $0x20] sm:$0xff] %v908
          %1140 = vst [vmem:[%s1134 + $0x28] sm:$0xff] %v913
          %1141 = vst [vmem:[%s1134 + $0x30] sm:$0xff] %v918
          %1142 = vst [vmem:[%s1134 + $0x38] sm:$0xff] %v923
          %1143 = vst [vmem:[%s1134 + $0x40] sm:$0xff] %v928
          %1144 = vst [vmem:[%s1134 + $0x48] sm:$0xff] %v933
          %1145 = vst [vmem:[%s1134 + $0x50] sm:$0xff] %v938
          %1146 = vst [vmem:[%s1134 + $0x58] sm:$0xff] %v943
          %1147 = vst [vmem:[%s1134 + $0x60] sm:$0xff] %v948
          %1148 = vst [vmem:[%s1134 + $0x68] sm:$0xff] %v953
          %1149 = vst [vmem:[%s1134 + $0x70] sm:$0xff] %v958
          %1150 = vst [vmem:[%s1134 + $0x78] sm:$0xff] %v963
          %s1151 = scalar_lea.vmem [#allocation7], %s777
          %1152 = vst [vmem:[%s1151] sm:$0xff] %v1056
          %1153 = vst [vmem:[%s1151 + $0x8] sm:$0xff] %v1061
          %1154 = vst [vmem:[%s1151 + $0x10] sm:$0xff] %v1066
          %1155 = vst [vmem:[%s1151 + $0x18] sm:$0xff] %v1071
          %1156 = vst [vmem:[%s1151 + $0x20] sm:$0xff] %v1076
          %1157 = vst [vmem:[%s1151 + $0x28] sm:$0xff] %v1081
          %1158 = vst [vmem:[%s1151 + $0x30] sm:$0xff] %v1086
          %1159 = vst [vmem:[%s1151 + $0x38] sm:$0xff] %v1091
          %1160 = vst [vmem:[%s1151 + $0x40] sm:$0xff] %v1096
          %1161 = vst [vmem:[%s1151 + $0x48] sm:$0xff] %v1101
          %1162 = vst [vmem:[%s1151 + $0x50] sm:$0xff] %v1106
          %1163 = vst [vmem:[%s1151 + $0x58] sm:$0xff] %v1111
          %1164 = vst [vmem:[%s1151 + $0x60] sm:$0xff] %v1116
          %1165 = vst [vmem:[%s1151 + $0x68] sm:$0xff] %v1121
          %1166 = vst [vmem:[%s1151 + $0x70] sm:$0xff] %v1126
          %1167 = vst [vmem:[%s1151 + $0x78] sm:$0xff] %v1131
        $region92: #{tpu_custom_call.1} parent=59 // pred_fallthru
          _
        %s1168 = scalar_lea.vmem [#allocation6], %s777
        %v1169 = vld [vmem:[%s1168] sm:$0xff]
        %v1170 = vld [vmem:[%s1168 + $0x8] sm:$0xff]
        %v1171 = vld [vmem:[%s1168 + $0x10] sm:$0xff]
        %v1172 = vld [vmem:[%s1168 + $0x18] sm:$0xff]
        %v1173 = vld [vmem:[%s1168 + $0x20] sm:$0xff]
        %v1174 = vld [vmem:[%s1168 + $0x28] sm:$0xff]
        %v1175 = vld [vmem:[%s1168 + $0x30] sm:$0xff]
        %v1176 = vld [vmem:[%s1168 + $0x38] sm:$0xff]
        %v1177 = vld [vmem:[%s1168 + $0x40] sm:$0xff]
        %v1178 = vld [vmem:[%s1168 + $0x48] sm:$0xff]
        %v1179 = vld [vmem:[%s1168 + $0x50] sm:$0xff]
        %v1180 = vld [vmem:[%s1168 + $0x58] sm:$0xff]
        %v1181 = vld [vmem:[%s1168 + $0x60] sm:$0xff]
        %v1182 = vld [vmem:[%s1168 + $0x68] sm:$0xff]
        %v1183 = vld [vmem:[%s1168 + $0x70] sm:$0xff]
        %v1184 = vld [vmem:[%s1168 + $0x78] sm:$0xff]
        %s1185 = scalar_lea.vmem [#allocation7], %s777
        %v1186 = vld [vmem:[%s1185] sm:$0xff]
        %v1187 = vld [vmem:[%s1185 + $0x8] sm:$0xff]
        %v1188 = vld [vmem:[%s1185 + $0x10] sm:$0xff]
        %v1189 = vld [vmem:[%s1185 + $0x18] sm:$0xff]
        %v1190 = vld [vmem:[%s1185 + $0x20] sm:$0xff]
        %v1191 = vld [vmem:[%s1185 + $0x28] sm:$0xff]
        %v1192 = vld [vmem:[%s1185 + $0x30] sm:$0xff]
        %v1193 = vld [vmem:[%s1185 + $0x38] sm:$0xff]
        %v1194 = vld [vmem:[%s1185 + $0x40] sm:$0xff]
        %v1195 = vld [vmem:[%s1185 + $0x48] sm:$0xff]
        %v1196 = vld [vmem:[%s1185 + $0x50] sm:$0xff]
        %v1197 = vld [vmem:[%s1185 + $0x58] sm:$0xff]
        %v1198 = vld [vmem:[%s1185 + $0x60] sm:$0xff]
        %v1199 = vld [vmem:[%s1185 + $0x68] sm:$0xff]
        %v1200 = vld [vmem:[%s1185 + $0x70] sm:$0xff]
        %v1201 = vld [vmem:[%s1185 + $0x78] sm:$0xff]
        %v1202 = vld [vmem:[#allocation2] sm:$0xff]
        %v1203 = vld [vmem:[#allocation2 + $0x8] sm:$0xff]
        %v1204 = vld [vmem:[#allocation2 + $0x10] sm:$0xff]
        %v1205 = vld [vmem:[#allocation2 + $0x18] sm:$0xff]
        %v1206 = vld [vmem:[#allocation2 + $0x20] sm:$0xff]
        %v1207 = vld [vmem:[#allocation2 + $0x28] sm:$0xff]
        %v1208 = vld [vmem:[#allocation2 + $0x30] sm:$0xff]
        %v1209 = vld [vmem:[#allocation2 + $0x38] sm:$0xff]
        %v1210 = vld [vmem:[#allocation2 + $0x40] sm:$0xff]
        %v1211 = vld [vmem:[#allocation2 + $0x48] sm:$0xff]
        %v1212 = vld [vmem:[#allocation2 + $0x50] sm:$0xff]
        %v1213 = vld [vmem:[#allocation2 + $0x58] sm:$0xff]
        %v1214 = vld [vmem:[#allocation2 + $0x60] sm:$0xff]
        %v1215 = vld [vmem:[#allocation2 + $0x68] sm:$0xff]
        %v1216 = vld [vmem:[#allocation2 + $0x70] sm:$0xff]
        %v1217 = vld [vmem:[#allocation2 + $0x78] sm:$0xff]
        %1218 = vmatprep.subr.mxu0 0.0
        %1219 = vmatpush1.xpose.msra.mxu0 %v1169
        %1220 = vmatprep.subr.mxu0 0.0
        %1221 = vmatpush1.xpose.msra.mxu0 %v1170
        %1222 = vmatprep.subr.mxu0 0.0
        %1223 = vmatpush1.xpose.msra.mxu0 %v1171
        %1224 = vmatprep.subr.mxu0 0.0
        %1225 = vmatpush1.xpose.msra.mxu0 %v1172
        %1226 = vmatprep.subr.mxu0 0.0
        %1227 = vmatpush1.xpose.msra.mxu0 %v1173
        %1228 = vmatprep.subr.mxu0 0.0
        %1229 = vmatpush1.xpose.msra.mxu0 %v1174
        %1230 = vmatprep.subr.mxu0 0.0
        %1231 = vmatpush1.xpose.msra.mxu0 %v1175
        %1232 = vmatprep.subr.mxu0 0.0
        %1233 = vmatpush1.xpose.msra.mxu0 %v1176
        %1234 = vmatprep.subr.mxu0 0.0
        %1235 = vmatpush1.xpose.msra.mxu0 %v1177
        %1236 = vmatprep.subr.mxu0 0.0
        %1237 = vmatpush1.xpose.msra.mxu0 %v1178
        %1238 = vmatprep.subr.mxu0 0.0
        %1239 = vmatpush1.xpose.msra.mxu0 %v1179
        %1240 = vmatprep.subr.mxu0 0.0
        %1241 = vmatpush1.xpose.msra.mxu0 %v1180
        %1242 = vmatprep.subr.mxu0 0.0
        %1243 = vmatpush1.xpose.msra.mxu0 %v1181
        %1244 = vmatprep.subr.mxu0 0.0
        %1245 = vmatpush1.xpose.msra.mxu0 %v1182
        %1246 = vmatprep.subr.mxu0 0.0
        %1247 = vmatpush1.xpose.msra.mxu0 %v1183
        %1248 = vmatprep.subr.mxu0 0.0
        %1249 = vmatpush1.xpose.msra.mxu0 %v1184
        %1250 = vmatprep.subr.mxu0 0.0
        %1251 = vmatpush1.xpose.msra.mxu0 0.0
        %1252 = vmatprep.subr.mxu0 0.0
        %1253 = vmatpush1.xpose.msra.mxu0 0.0
        %1254 = vmatprep.subr.mxu0 0.0
        %1255 = vmatpush1.xpose.msra.mxu0 0.0
        %1256 = vmatprep.subr.mxu0 0.0
        %1257 = vmatpush1.xpose.msra.mxu0 0.0
        %1258 = vmatprep.subr.mxu0 0.0
        %1259 = vmatpush1.xpose.msra.mxu0 0.0
        %1260 = vmatprep.subr.mxu0 0.0
        %1261 = vmatpush1.xpose.msra.mxu0 0.0
        %1262 = vmatprep.subr.mxu0 0.0
        %1263 = vmatpush1.xpose.msra.mxu0 0.0
        %1264 = vmatprep.subr.mxu0 0.0
        %1265 = vmatpush1.xpose.msra.mxu0 0.0
        %1266 = vmatprep.subr.mxu0 0.0
        %1267 = vmatpush1.xpose.msra.mxu0 0.0
        %1268 = vmatprep.subr.mxu0 0.0
        %1269 = vmatpush1.xpose.msra.mxu0 0.0
        %1270 = vmatprep.subr.mxu0 0.0
        %1271 = vmatpush1.xpose.msra.mxu0 0.0
        %1272 = vmatprep.subr.mxu0 0.0
        %1273 = vmatpush1.xpose.msra.mxu0 0.0
        %1274 = vmatprep.subr.mxu0 0.0
        %1275 = vmatpush1.xpose.msra.mxu0 0.0
        %1276 = vmatprep.subr.mxu0 0.0
        %1277 = vmatpush1.xpose.msra.mxu0 0.0
        %1278 = vmatprep.subr.mxu0 0.0
        %1279 = vmatpush1.xpose.msra.mxu0 0.0
        %1280 = vmatprep.subr.mxu0 0.0
        %1281 = vmatpush1.xpose.msra.mxu0 0.0
        %1282 = vmatprep.mubr.f32.mxu0 0.0
        %1283 = vmatmul.mubr.f32.gmra.mrb[0].mxu0 %v1202
        %v1284 = vpop.f32.mrb[0].mxu0
        %v1285 = vadd.f32 0.0, %v1284
        %v1286 = vpop.f32.mrb[0].mxu0
        %1287 = vmatprep.mubr.f32.mxu0 0.0
        %1288 = vmatmul.mubr.f32.gmra.mrb[0].mxu0 %v1203
        %v1289 = vpop.f32.mrb[0].mxu0
        %v1290 = vadd.f32 0.0, %v1289
        %v1291 = vpop.f32.mrb[0].mxu0
        %1292 = vmatprep.mubr.f32.mxu0 0.0
        %1293 = vmatmul.mubr.f32.gmra.mrb[0].mxu0 %v1204
        %v1294 = vpop.f32.mrb[0].mxu0
        %v1295 = vadd.f32 0.0, %v1294
        %v1296 = vpop.f32.mrb[0].mxu0
        %1297 = vmatprep.mubr.f32.mxu0 0.0
        %1298 = vmatmul.mubr.f32.gmra.mrb[0].mxu0 %v1205
        %v1299 = vpop.f32.mrb[0].mxu0
        %v1300 = vadd.f32 0.0, %v1299
        %v1301 = vpop.f32.mrb[0].mxu0
        %1302 = vmatprep.mubr.f32.mxu0 0.0
        %1303 = vmatmul.mubr.f32.gmra.mrb[0].mxu0 %v1206
        %v1304 = vpop.f32.mrb[0].mxu0
        %v1305 = vadd.f32 0.0, %v1304
        %v1306 = vpop.f32.mrb[0].mxu0
        %1307 = vmatprep.mubr.f32.mxu0 0.0
        %1308 = vmatmul.mubr.f32.gmra.mrb[0].mxu0 %v1207
        %v1309 = vpop.f32.mrb[0].mxu0
        %v1310 = vadd.f32 0.0, %v1309
        %v1311 = vpop.f32.mrb[0].mxu0
        %1312 = vmatprep.mubr.f32.mxu0 0.0
        %1313 = vmatmul.mubr.f32.gmra.mrb[0].mxu0 %v1208
        %v1314 = vpop.f32.mrb[0].mxu0
        %v1315 = vadd.f32 0.0, %v1314
        %v1316 = vpop.f32.mrb[0].mxu0
        %1317 = vmatprep.mubr.f32.mxu0 0.0
        %1318 = vmatmul.mubr.f32.gmra.mrb[0].mxu0 %v1209
        %v1319 = vpop.f32.mrb[0].mxu0
        %v1320 = vadd.f32 0.0, %v1319
        %v1321 = vpop.f32.mrb[0].mxu0
        %1322 = vmatprep.mubr.f32.mxu0 0.0
        %1323 = vmatmul.mubr.f32.gmra.mrb[0].mxu0 %v1210
        %v1324 = vpop.f32.mrb[0].mxu0
        %v1325 = vadd.f32 0.0, %v1324
        %v1326 = vpop.f32.mrb[0].mxu0
        %1327 = vmatprep.mubr.f32.mxu0 0.0
        %1328 = vmatmul.mubr.f32.gmra.mrb[0].mxu0 %v1211
        %v1329 = vpop.f32.mrb[0].mxu0
        %v1330 = vadd.f32 0.0, %v1329
        %v1331 = vpop.f32.mrb[0].mxu0
        %1332 = vmatprep.mubr.f32.mxu0 0.0
        %1333 = vmatmul.mubr.f32.gmra.mrb[0].mxu0 %v1212
        %v1334 = vpop.f32.mrb[0].mxu0
        %v1335 = vadd.f32 0.0, %v1334
        %v1336 = vpop.f32.mrb[0].mxu0
        %1337 = vmatprep.mubr.f32.mxu0 0.0
        %1338 = vmatmul.mubr.f32.gmra.mrb[0].mxu0 %v1213
        %v1339 = vpop.f32.mrb[0].mxu0
        %v1340 = vadd.f32 0.0, %v1339
        %v1341 = vpop.f32.mrb[0].mxu0
        %1342 = vmatprep.mubr.f32.mxu0 0.0
        %1343 = vmatmul.mubr.f32.gmra.mrb[0].mxu0 %v1214
        %v1344 = vpop.f32.mrb[0].mxu0
        %v1345 = vadd.f32 0.0, %v1344
        %v1346 = vpop.f32.mrb[0].mxu0
        %1347 = vmatprep.mubr.f32.mxu0 0.0
        %1348 = vmatmul.mubr.f32.gmra.mrb[0].mxu0 %v1215
        %v1349 = vpop.f32.mrb[0].mxu0
        %v1350 = vadd.f32 0.0, %v1349
        %v1351 = vpop.f32.mrb[0].mxu0
        %1352 = vmatprep.mubr.f32.mxu0 0.0
        %1353 = vmatmul.mubr.f32.gmra.mrb[0].mxu0 %v1216
        %v1354 = vpop.f32.mrb[0].mxu0
        %v1355 = vadd.f32 0.0, %v1354
        %v1356 = vpop.f32.mrb[0].mxu0
        %1357 = vmatprep.mubr.f32.mxu0 0.0
        %1358 = vmatmul.mubr.f32.gmra.mrb[0].mxu0 %v1217
        %v1359 = vpop.f32.mrb[0].mxu0
        %v1360 = vadd.f32 0.0, %v1359
        %v1361 = vpop.f32.mrb[0].mxu0
        %1362 = vdwg.mxu0
        %v1363 = vld [vmem:[#allocation3] sm:$0xff]
        %v1364 = vld [vmem:[#allocation3 + $0x8] sm:$0xff]
        %v1365 = vld [vmem:[#allocation3 + $0x10] sm:$0xff]
        %v1366 = vld [vmem:[#allocation3 + $0x18] sm:$0xff]
        %v1367 = vld [vmem:[#allocation3 + $0x20] sm:$0xff]
        %v1368 = vld [vmem:[#allocation3 + $0x28] sm:$0xff]
        %v1369 = vld [vmem:[#allocation3 + $0x30] sm:$0xff]
        %v1370 = vld [vmem:[#allocation3 + $0x38] sm:$0xff]
        %v1371 = vld [vmem:[#allocation3 + $0x40] sm:$0xff]
        %v1372 = vld [vmem:[#allocation3 + $0x48] sm:$0xff]
        %v1373 = vld [vmem:[#allocation3 + $0x50] sm:$0xff]
        %v1374 = vld [vmem:[#allocation3 + $0x58] sm:$0xff]
        %v1375 = vld [vmem:[#allocation3 + $0x60] sm:$0xff]
        %v1376 = vld [vmem:[#allocation3 + $0x68] sm:$0xff]
        %v1377 = vld [vmem:[#allocation3 + $0x70] sm:$0xff]
        %v1378 = vld [vmem:[#allocation3 + $0x78] sm:$0xff]
        %1379 = vmax.xlane.f32.xlu0 %v1285
        %v1380 = vpop.xlane.xlu0 %1379
        %1381 = vmax.xlane.f32.xlu0 %v1290
        %v1382 = vpop.xlane.xlu0 %1381
        %1383 = vmax.xlane.f32.xlu0 %v1295
        %v1384 = vpop.xlane.xlu0 %1383
        %1385 = vmax.xlane.f32.xlu0 %v1300
        %v1386 = vpop.xlane.xlu0 %1385
        %1387 = vmax.xlane.f32.xlu0 %v1305
        %v1388 = vpop.xlane.xlu0 %1387
        %1389 = vmax.xlane.f32.xlu0 %v1310
        %v1390 = vpop.xlane.xlu0 %1389
        %1391 = vmax.xlane.f32.xlu0 %v1315
        %v1392 = vpop.xlane.xlu0 %1391
        %1393 = vmax.xlane.f32.xlu0 %v1320
        %v1394 = vpop.xlane.xlu0 %1393
        %1395 = vmax.xlane.f32.xlu0 %v1325
        %v1396 = vpop.xlane.xlu0 %1395
        %1397 = vmax.xlane.f32.xlu0 %v1330
        %v1398 = vpop.xlane.xlu0 %1397
        %1399 = vmax.xlane.f32.xlu0 %v1335
        %v1400 = vpop.xlane.xlu0 %1399
        %1401 = vmax.xlane.f32.xlu0 %v1340
        %v1402 = vpop.xlane.xlu0 %1401
        %1403 = vmax.xlane.f32.xlu0 %v1345
        %v1404 = vpop.xlane.xlu0 %1403
        %1405 = vmax.xlane.f32.xlu0 %v1350
        %v1406 = vpop.xlane.xlu0 %1405
        %1407 = vmax.xlane.f32.xlu0 %v1355
        %v1408 = vpop.xlane.xlu0 %1407
        %1409 = vmax.xlane.f32.xlu0 %v1360
        %v1410 = vpop.xlane.xlu0 %1409
        %v1411 = vmax.f32 %v1363, %v1380
        %v1412 = vmax.f32 %v1364, %v1382
        %v1413 = vmax.f32 %v1365, %v1384
        %v1414 = vmax.f32 %v1366, %v1386
        %v1415 = vmax.f32 %v1367, %v1388
        %v1416 = vmax.f32 %v1368, %v1390
        %v1417 = vmax.f32 %v1369, %v1392
        %v1418 = vmax.f32 %v1370, %v1394
        %v1419 = vmax.f32 %v1371, %v1396
        %v1420 = vmax.f32 %v1372, %v1398
        %v1421 = vmax.f32 %v1373, %v1400
        %v1422 = vmax.f32 %v1374, %v1402
        %v1423 = vmax.f32 %v1375, %v1404
        %v1424 = vmax.f32 %v1376, %v1406
        %v1425 = vmax.f32 %v1377, %v1408
        %v1426 = vmax.f32 %v1378, %v1410
        %v1427 = vsub.f32 %v1363, %v1411
        %v1428 = vsub.f32 %v1364, %v1412
        %v1429 = vsub.f32 %v1365, %v1413
        %v1430 = vsub.f32 %v1366, %v1414
        %v1431 = vsub.f32 %v1367, %v1415
        %v1432 = vsub.f32 %v1368, %v1416
        %v1433 = vsub.f32 %v1369, %v1417
        %v1434 = vsub.f32 %v1370, %v1418
        %v1435 = vsub.f32 %v1371, %v1419
        %v1436 = vsub.f32 %v1372, %v1420
        %v1437 = vsub.f32 %v1373, %v1421
        %v1438 = vsub.f32 %v1374, %v1422
        %v1439 = vsub.f32 %v1375, %v1423
        %v1440 = vsub.f32 %v1376, %v1424
        %v1441 = vsub.f32 %v1377, %v1425
        %v1442 = vsub.f32 %v1378, %v1426
        %v1443 = vmul.f32 %v1427, 1.442695
        %v1444 = vpow.pop %v1443
        %v1445 = vmul.f32 %v1428, 1.442695
        %v1446 = vpow.pop %v1445
        %v1447 = vmul.f32 %v1429, 1.442695
        %v1448 = vpow.pop %v1447
        %v1449 = vmul.f32 %v1430, 1.442695
        %v1450 = vpow.pop %v1449
        %v1451 = vmul.f32 %v1431, 1.442695
        %v1452 = vpow.pop %v1451
        %v1453 = vmul.f32 %v1432, 1.442695
        %v1454 = vpow.pop %v1453
        %v1455 = vmul.f32 %v1433, 1.442695
        %v1456 = vpow.pop %v1455
        %v1457 = vmul.f32 %v1434, 1.442695
        %v1458 = vpow.pop %v1457
        %v1459 = vmul.f32 %v1435, 1.442695
        %v1460 = vpow.pop %v1459
        %v1461 = vmul.f32 %v1436, 1.442695
        %v1462 = vpow.pop %v1461
        %v1463 = vmul.f32 %v1437, 1.442695
        %v1464 = vpow.pop %v1463
        %v1465 = vmul.f32 %v1438, 1.442695
        %v1466 = vpow.pop %v1465
        %v1467 = vmul.f32 %v1439, 1.442695
        %v1468 = vpow.pop %v1467
        %v1469 = vmul.f32 %v1440, 1.442695
        %v1470 = vpow.pop %v1469
        %v1471 = vmul.f32 %v1441, 1.442695
        %v1472 = vpow.pop %v1471
        %v1473 = vmul.f32 %v1442, 1.442695
        %v1474 = vpow.pop %v1473
        %1476 = vset.pattern.permute.xlu0 0
        %1477 = vperm.xlu0 %1476, %v1411
        %v1478 = vpop.permute.xlu0 %1477
        %1481 = vset.pattern.permute.xlu0 0
        %1482 = vperm.xlu0 %1481, %v1412
        %v1483 = vpop.permute.xlu0 %1482
        %1486 = vset.pattern.permute.xlu0 0
        %1487 = vperm.xlu0 %1486, %v1413
        %v1488 = vpop.permute.xlu0 %1487
        %1491 = vset.pattern.permute.xlu0 0
        %1492 = vperm.xlu0 %1491, %v1414
        %v1493 = vpop.permute.xlu0 %1492
        %1496 = vset.pattern.permute.xlu0 0
        %1497 = vperm.xlu0 %1496, %v1415
        %v1498 = vpop.permute.xlu0 %1497
        %1501 = vset.pattern.permute.xlu0 0
        %1502 = vperm.xlu0 %1501, %v1416
        %v1503 = vpop.permute.xlu0 %1502
        %1506 = vset.pattern.permute.xlu0 0
        %1507 = vperm.xlu0 %1506, %v1417
        %v1508 = vpop.permute.xlu0 %1507
        %1511 = vset.pattern.permute.xlu0 0
        %1512 = vperm.xlu0 %1511, %v1418
        %v1513 = vpop.permute.xlu0 %1512
        %1516 = vset.pattern.permute.xlu0 0
        %1517 = vperm.xlu0 %1516, %v1419
        %v1518 = vpop.permute.xlu0 %1517
        %1521 = vset.pattern.permute.xlu0 0
        %1522 = vperm.xlu0 %1521, %v1420
        %v1523 = vpop.permute.xlu0 %1522
        %1526 = vset.pattern.permute.xlu0 0
        %1527 = vperm.xlu0 %1526, %v1421
        %v1528 = vpop.permute.xlu0 %1527
        %1531 = vset.pattern.permute.xlu0 0
        %1532 = vperm.xlu0 %1531, %v1422
        %v1533 = vpop.permute.xlu0 %1532
        %1536 = vset.pattern.permute.xlu0 0
        %1537 = vperm.xlu0 %1536, %v1423
        %v1538 = vpop.permute.xlu0 %1537
        %1541 = vset.pattern.permute.xlu0 0
        %1542 = vperm.xlu0 %1541, %v1424
        %v1543 = vpop.permute.xlu0 %1542
        %1546 = vset.pattern.permute.xlu0 0
        %1547 = vperm.xlu0 %1546, %v1425
        %v1548 = vpop.permute.xlu0 %1547
        %1551 = vset.pattern.permute.xlu0 0
        %1552 = vperm.xlu0 %1551, %v1426
        %v1553 = vpop.permute.xlu0 %1552
        %v1555 = vsub.f32 %v1285, %v1478
        %v1556 = vsub.f32 %v1290, %v1483
        %v1557 = vsub.f32 %v1295, %v1488
        %v1558 = vsub.f32 %v1300, %v1493
        %v1559 = vsub.f32 %v1305, %v1498
        %v1560 = vsub.f32 %v1310, %v1503
        %v1561 = vsub.f32 %v1315, %v1508
        %v1562 = vsub.f32 %v1320, %v1513
        %v1563 = vsub.f32 %v1325, %v1518
        %v1564 = vsub.f32 %v1330, %v1523
        %v1565 = vsub.f32 %v1335, %v1528
        %v1566 = vsub.f32 %v1340, %v1533
        %v1567 = vsub.f32 %v1345, %v1538
        %v1568 = vsub.f32 %v1350, %v1543
        %v1569 = vsub.f32 %v1355, %v1548
        %v1570 = vsub.f32 %v1360, %v1553
        %v1571 = vmul.f32 %v1555, 1.442695
        %v1572 = vpow.pop %v1571
        %v1573 = vmul.f32 %v1556, 1.442695
        %v1574 = vpow.pop %v1573
        %v1575 = vmul.f32 %v1557, 1.442695
        %v1576 = vpow.pop %v1575
        %v1577 = vmul.f32 %v1558, 1.442695
        %v1578 = vpow.pop %v1577
        %v1579 = vmul.f32 %v1559, 1.442695
        %v1580 = vpow.pop %v1579
        %v1581 = vmul.f32 %v1560, 1.442695
        %v1582 = vpow.pop %v1581
        %v1583 = vmul.f32 %v1561, 1.442695
        %v1584 = vpow.pop %v1583
        %v1585 = vmul.f32 %v1562, 1.442695
        %v1586 = vpow.pop %v1585
        %v1587 = vmul.f32 %v1563, 1.442695
        %v1588 = vpow.pop %v1587
        %v1589 = vmul.f32 %v1564, 1.442695
        %v1590 = vpow.pop %v1589
        %v1591 = vmul.f32 %v1565, 1.442695
        %v1592 = vpow.pop %v1591
        %v1593 = vmul.f32 %v1566, 1.442695
        %v1594 = vpow.pop %v1593
        %v1595 = vmul.f32 %v1567, 1.442695
        %v1596 = vpow.pop %v1595
        %v1597 = vmul.f32 %v1568, 1.442695
        %v1598 = vpow.pop %v1597
        %v1599 = vmul.f32 %v1569, 1.442695
        %v1600 = vpow.pop %v1599
        %v1601 = vmul.f32 %v1570, 1.442695
        %v1602 = vpow.pop %v1601
        %v1603 = vld [vmem:[#allocation4] sm:$0xff]
        %v1604 = vld [vmem:[#allocation4 + $0x8] sm:$0xff]
        %v1605 = vld [vmem:[#allocation4 + $0x10] sm:$0xff]
        %v1606 = vld [vmem:[#allocation4 + $0x18] sm:$0xff]
        %v1607 = vld [vmem:[#allocation4 + $0x20] sm:$0xff]
        %v1608 = vld [vmem:[#allocation4 + $0x28] sm:$0xff]
        %v1609 = vld [vmem:[#allocation4 + $0x30] sm:$0xff]
        %v1610 = vld [vmem:[#allocation4 + $0x38] sm:$0xff]
        %v1611 = vld [vmem:[#allocation4 + $0x40] sm:$0xff]
        %v1612 = vld [vmem:[#allocation4 + $0x48] sm:$0xff]
        %v1613 = vld [vmem:[#allocation4 + $0x50] sm:$0xff]
        %v1614 = vld [vmem:[#allocation4 + $0x58] sm:$0xff]
        %v1615 = vld [vmem:[#allocation4 + $0x60] sm:$0xff]
        %v1616 = vld [vmem:[#allocation4 + $0x68] sm:$0xff]
        %v1617 = vld [vmem:[#allocation4 + $0x70] sm:$0xff]
        %v1618 = vld [vmem:[#allocation4 + $0x78] sm:$0xff]
        %v1619 = vmul.f32 %v1444, %v1603
        %v1620 = vmul.f32 %v1446, %v1604
        %v1621 = vmul.f32 %v1448, %v1605
        %v1622 = vmul.f32 %v1450, %v1606
        %v1623 = vmul.f32 %v1452, %v1607
        %v1624 = vmul.f32 %v1454, %v1608
        %v1625 = vmul.f32 %v1456, %v1609
        %v1626 = vmul.f32 %v1458, %v1610
        %v1627 = vmul.f32 %v1460, %v1611
        %v1628 = vmul.f32 %v1462, %v1612
        %v1629 = vmul.f32 %v1464, %v1613
        %v1630 = vmul.f32 %v1466, %v1614
        %v1631 = vmul.f32 %v1468, %v1615
        %v1632 = vmul.f32 %v1470, %v1616
        %v1633 = vmul.f32 %v1472, %v1617
        %v1634 = vmul.f32 %v1474, %v1618
        %1635 = vadd.xlane.f32.xlu0 %v1572
        %v1636 = vpop.xlane.xlu0 %1635
        %1637 = vadd.xlane.f32.xlu0 %v1574
        %v1638 = vpop.xlane.xlu0 %1637
        %1639 = vadd.xlane.f32.xlu0 %v1576
        %v1640 = vpop.xlane.xlu0 %1639
        %1641 = vadd.xlane.f32.xlu0 %v1578
        %v1642 = vpop.xlane.xlu0 %1641
        %1643 = vadd.xlane.f32.xlu0 %v1580
        %v1644 = vpop.xlane.xlu0 %1643
        %1645 = vadd.xlane.f32.xlu0 %v1582
        %v1646 = vpop.xlane.xlu0 %1645
        %1647 = vadd.xlane.f32.xlu0 %v1584
        %v1648 = vpop.xlane.xlu0 %1647
        %1649 = vadd.xlane.f32.xlu0 %v1586
        %v1650 = vpop.xlane.xlu0 %1649
        %1651 = vadd.xlane.f32.xlu0 %v1588
        %v1652 = vpop.xlane.xlu0 %1651
        %1653 = vadd.xlane.f32.xlu0 %v1590
        %v1654 = vpop.xlane.xlu0 %1653
        %1655 = vadd.xlane.f32.xlu0 %v1592
        %v1656 = vpop.xlane.xlu0 %1655
        %1657 = vadd.xlane.f32.xlu0 %v1594
        %v1658 = vpop.xlane.xlu0 %1657
        %1659 = vadd.xlane.f32.xlu0 %v1596
        %v1660 = vpop.xlane.xlu0 %1659
        %1661 = vadd.xlane.f32.xlu0 %v1598
        %v1662 = vpop.xlane.xlu0 %1661
        %1663 = vadd.xlane.f32.xlu0 %v1600
        %v1664 = vpop.xlane.xlu0 %1663
        %1665 = vadd.xlane.f32.xlu0 %v1602
        %v1666 = vpop.xlane.xlu0 %1665
        %v1667 = vadd.f32 %v1619, %v1636
        %v1668 = vadd.f32 %v1620, %v1638
        %v1669 = vadd.f32 %v1621, %v1640
        %v1670 = vadd.f32 %v1622, %v1642
        %v1671 = vadd.f32 %v1623, %v1644
        %v1672 = vadd.f32 %v1624, %v1646
        %v1673 = vadd.f32 %v1625, %v1648
        %v1674 = vadd.f32 %v1626, %v1650
        %v1675 = vadd.f32 %v1627, %v1652
        %v1676 = vadd.f32 %v1628, %v1654
        %v1677 = vadd.f32 %v1629, %v1656
        %v1678 = vadd.f32 %v1630, %v1658
        %v1679 = vadd.f32 %v1631, %v1660
        %v1680 = vadd.f32 %v1632, %v1662
        %v1681 = vadd.f32 %v1633, %v1664
        %v1682 = vadd.f32 %v1634, %v1666
        %vm1683 = vcmask 7168
        %1684 = vst.msk [vmem:[#allocation4] sm:$0xff] %vm1683, %v1667
        %1685 = vst.msk [vmem:[#allocation4 + $0x8] sm:$0xff] %vm1683, %v1668
        %1686 = vst.msk [vmem:[#allocation4 + $0x10] sm:$0xff] %vm1683, %v1669
        %1687 = vst.msk [vmem:[#allocation4 + $0x18] sm:$0xff] %vm1683, %v1670
        %1688 = vst.msk [vmem:[#allocation4 + $0x20] sm:$0xff] %vm1683, %v1671
        %1689 = vst.msk [vmem:[#allocation4 + $0x28] sm:$0xff] %vm1683, %v1672
        %1690 = vst.msk [vmem:[#allocation4 + $0x30] sm:$0xff] %vm1683, %v1673
        %1691 = vst.msk [vmem:[#allocation4 + $0x38] sm:$0xff] %vm1683, %v1674
        %1692 = vst.msk [vmem:[#allocation4 + $0x40] sm:$0xff] %vm1683, %v1675
        %1693 = vst.msk [vmem:[#allocation4 + $0x48] sm:$0xff] %vm1683, %v1676
        %1694 = vst.msk [vmem:[#allocation4 + $0x50] sm:$0xff] %vm1683, %v1677
        %1695 = vst.msk [vmem:[#allocation4 + $0x58] sm:$0xff] %vm1683, %v1678
        %1696 = vst.msk [vmem:[#allocation4 + $0x60] sm:$0xff] %vm1683, %v1679
        %1697 = vst.msk [vmem:[#allocation4 + $0x68] sm:$0xff] %vm1683, %v1680
        %1698 = vst.msk [vmem:[#allocation4 + $0x70] sm:$0xff] %vm1683, %v1681
        %1699 = vst.msk [vmem:[#allocation4 + $0x78] sm:$0xff] %vm1683, %v1682
        %v1700 = vld [vmem:[#allocation5] sm:$0xff]
        %v1701 = vld [vmem:[#allocation5 + $0x8] sm:$0xff]
        %v1702 = vld [vmem:[#allocation5 + $0x10] sm:$0xff]
        %v1703 = vld [vmem:[#allocation5 + $0x18] sm:$0xff]
        %v1704 = vld [vmem:[#allocation5 + $0x20] sm:$0xff]
        %v1705 = vld [vmem:[#allocation5 + $0x28] sm:$0xff]
        %v1706 = vld [vmem:[#allocation5 + $0x30] sm:$0xff]
        %v1707 = vld [vmem:[#allocation5 + $0x38] sm:$0xff]
        %v1708 = vld [vmem:[#allocation5 + $0x40] sm:$0xff]
        %v1709 = vld [vmem:[#allocation5 + $0x48] sm:$0xff]
        %v1710 = vld [vmem:[#allocation5 + $0x50] sm:$0xff]
        %v1711 = vld [vmem:[#allocation5 + $0x58] sm:$0xff]
        %v1712 = vld [vmem:[#allocation5 + $0x60] sm:$0xff]
        %v1713 = vld [vmem:[#allocation5 + $0x68] sm:$0xff]
        %v1714 = vld [vmem:[#allocation5 + $0x70] sm:$0xff]
        %v1715 = vld [vmem:[#allocation5 + $0x78] sm:$0xff]
        %1717 = vset.pattern.permute.xlu0 0
        %1718 = vperm.xlu0 %1717, %v1444
        %v1719 = vpop.permute.xlu0 %1718
        %1722 = vset.pattern.permute.xlu0 0
        %1723 = vperm.xlu0 %1722, %v1446
        %v1724 = vpop.permute.xlu0 %1723
        %1727 = vset.pattern.permute.xlu0 0
        %1728 = vperm.xlu0 %1727, %v1448
        %v1729 = vpop.permute.xlu0 %1728
        %1732 = vset.pattern.permute.xlu0 0
        %1733 = vperm.xlu0 %1732, %v1450
        %v1734 = vpop.permute.xlu0 %1733
        %1737 = vset.pattern.permute.xlu0 0
        %1738 = vperm.xlu0 %1737, %v1452
        %v1739 = vpop.permute.xlu0 %1738
        %1742 = vset.pattern.permute.xlu0 0
        %1743 = vperm.xlu0 %1742, %v1454
        %v1744 = vpop.permute.xlu0 %1743
        %1747 = vset.pattern.permute.xlu0 0
        %1748 = vperm.xlu0 %1747, %v1456
        %v1749 = vpop.permute.xlu0 %1748
        %1752 = vset.pattern.permute.xlu0 0
        %1753 = vperm.xlu0 %1752, %v1458
        %v1754 = vpop.permute.xlu0 %1753
        %1757 = vset.pattern.permute.xlu0 0
        %1758 = vperm.xlu0 %1757, %v1460
        %v1759 = vpop.permute.xlu0 %1758
        %1762 = vset.pattern.permute.xlu0 0
        %1763 = vperm.xlu0 %1762, %v1462
        %v1764 = vpop.permute.xlu0 %1763
        %1767 = vset.pattern.permute.xlu0 0
        %1768 = vperm.xlu0 %1767, %v1464
        %v1769 = vpop.permute.xlu0 %1768
        %1772 = vset.pattern.permute.xlu0 0
        %1773 = vperm.xlu0 %1772, %v1466
        %v1774 = vpop.permute.xlu0 %1773
        %1777 = vset.pattern.permute.xlu0 0
        %1778 = vperm.xlu0 %1777, %v1468
        %v1779 = vpop.permute.xlu0 %1778
        %1782 = vset.pattern.permute.xlu0 0
        %1783 = vperm.xlu0 %1782, %v1470
        %v1784 = vpop.permute.xlu0 %1783
        %1787 = vset.pattern.permute.xlu0 0
        %1788 = vperm.xlu0 %1787, %v1472
        %v1789 = vpop.permute.xlu0 %1788
        %1792 = vset.pattern.permute.xlu0 0
        %1793 = vperm.xlu0 %1792, %v1474
        %v1794 = vpop.permute.xlu0 %1793
        %v1796 = vmul.f32 %v1719, %v1700
        %v1797 = vmul.f32 %v1724, %v1701
        %v1798 = vmul.f32 %v1729, %v1702
        %v1799 = vmul.f32 %v1734, %v1703
        %v1800 = vmul.f32 %v1739, %v1704
        %v1801 = vmul.f32 %v1744, %v1705
        %v1802 = vmul.f32 %v1749, %v1706
        %v1803 = vmul.f32 %v1754, %v1707
        %v1804 = vmul.f32 %v1759, %v1708
        %v1805 = vmul.f32 %v1764, %v1709
        %v1806 = vmul.f32 %v1769, %v1710
        %v1807 = vmul.f32 %v1774, %v1711
        %v1808 = vmul.f32 %v1779, %v1712
        %v1809 = vmul.f32 %v1784, %v1713
        %v1810 = vmul.f32 %v1789, %v1714
        %v1811 = vmul.f32 %v1794, %v1715
        %1812 = vmatprep.subr.mxu0 0.0
        %1813 = vmatpush1.msra.mxu0 %v1186
        %1814 = vmatprep.subr.mxu0 0.0
        %1815 = vmatpush1.msra.mxu0 %v1187
        %1816 = vmatprep.subr.mxu0 0.0
        %1817 = vmatpush1.msra.mxu0 %v1188
        %1818 = vmatprep.subr.mxu0 0.0
        %1819 = vmatpush1.msra.mxu0 %v1189
        %1820 = vmatprep.subr.mxu0 0.0
        %1821 = vmatpush1.msra.mxu0 %v1190
        %1822 = vmatprep.subr.mxu0 0.0
        %1823 = vmatpush1.msra.mxu0 %v1191
        %1824 = vmatprep.subr.mxu0 0.0
        %1825 = vmatpush1.msra.mxu0 %v1192
        %1826 = vmatprep.subr.mxu0 0.0
        %1827 = vmatpush1.msra.mxu0 %v1193
        %1828 = vmatprep.subr.mxu0 0.0
        %1829 = vmatpush1.msra.mxu0 %v1194
        %1830 = vmatprep.subr.mxu0 0.0
        %1831 = vmatpush1.msra.mxu0 %v1195
        %1832 = vmatprep.subr.mxu0 0.0
        %1833 = vmatpush1.msra.mxu0 %v1196
        %1834 = vmatprep.subr.mxu0 0.0
        %1835 = vmatpush1.msra.mxu0 %v1197
        %1836 = vmatprep.subr.mxu0 0.0
        %1837 = vmatpush1.msra.mxu0 %v1198
        %1838 = vmatprep.subr.mxu0 0.0
        %1839 = vmatpush1.msra.mxu0 %v1199
        %1840 = vmatprep.subr.mxu0 0.0
        %1841 = vmatpush1.msra.mxu0 %v1200
        %1842 = vmatprep.subr.mxu0 0.0
        %1843 = vmatpush1.msra.mxu0 %v1201
        %1844 = vmatprep.subr.mxu0 0.0
        %1845 = vmatpush1.msra.mxu0 0.0
        %1846 = vmatprep.subr.mxu0 0.0
        %1847 = vmatpush1.msra.mxu0 0.0
        %1848 = vmatprep.subr.mxu0 0.0
        %1849 = vmatpush1.msra.mxu0 0.0
        %1850 = vmatprep.subr.mxu0 0.0
        %1851 = vmatpush1.msra.mxu0 0.0
        %1852 = vmatprep.subr.mxu0 0.0
        %1853 = vmatpush1.msra.mxu0 0.0
        %1854 = vmatprep.subr.mxu0 0.0
        %1855 = vmatpush1.msra.mxu0 0.0
        %1856 = vmatprep.subr.mxu0 0.0
        %1857 = vmatpush1.msra.mxu0 0.0
        %1858 = vmatprep.subr.mxu0 0.0
        %1859 = vmatpush1.msra.mxu0 0.0
        %1860 = vmatprep.subr.mxu0 0.0
        %1861 = vmatpush1.msra.mxu0 0.0
        %1862 = vmatprep.subr.mxu0 0.0
        %1863 = vmatpush1.msra.mxu0 0.0
        %1864 = vmatprep.subr.mxu0 0.0
        %1865 = vmatpush1.msra.mxu0 0.0
        %1866 = vmatprep.subr.mxu0 0.0
        %1867 = vmatpush1.msra.mxu0 0.0
        %1868 = vmatprep.subr.mxu0 0.0
        %1869 = vmatpush1.msra.mxu0 0.0
        %1870 = vmatprep.subr.mxu0 0.0
        %1871 = vmatpush1.msra.mxu0 0.0
        %1872 = vmatprep.subr.mxu0 0.0
        %1873 = vmatpush1.msra.mxu0 0.0
        %1874 = vmatprep.subr.mxu0 0.0
        %1875 = vmatpush1.msra.mxu0 0.0
        %1876 = vmatprep.mubr.f32.mxu0 0.0
        %1877 = vmatmul.mubr.f32.gmra.mrb[0].mxu0 %v1572
        %v1878 = vpop.f32.mrb[0].mxu0
        %v1879 = vadd.f32 0.0, %v1878
        %v1880 = vpop.f32.mrb[0].mxu0
        %1881 = vmatprep.mubr.f32.mxu0 0.0
        %1882 = vmatmul.mubr.f32.gmra.mrb[0].mxu0 %v1574
        %v1883 = vpop.f32.mrb[0].mxu0
        %v1884 = vadd.f32 0.0, %v1883
        %v1885 = vpop.f32.mrb[0].mxu0
        %1886 = vmatprep.mubr.f32.mxu0 0.0
        %1887 = vmatmul.mubr.f32.gmra.mrb[0].mxu0 %v1576
        %v1888 = vpop.f32.mrb[0].mxu0
        %v1889 = vadd.f32 0.0, %v1888
        %v1890 = vpop.f32.mrb[0].mxu0
        %1891 = vmatprep.mubr.f32.mxu0 0.0
        %1892 = vmatmul.mubr.f32.gmra.mrb[0].mxu0 %v1578
        %v1893 = vpop.f32.mrb[0].mxu0
        %v1894 = vadd.f32 0.0, %v1893
        %v1895 = vpop.f32.mrb[0].mxu0
        %1896 = vmatprep.mubr.f32.mxu0 0.0
        %1897 = vmatmul.mubr.f32.gmra.mrb[0].mxu0 %v1580
        %v1898 = vpop.f32.mrb[0].mxu0
        %v1899 = vadd.f32 0.0, %v1898
        %v1900 = vpop.f32.mrb[0].mxu0
        %1901 = vmatprep.mubr.f32.mxu0 0.0
        %1902 = vmatmul.mubr.f32.gmra.mrb[0].mxu0 %v1582
        %v1903 = vpop.f32.mrb[0].mxu0
        %v1904 = vadd.f32 0.0, %v1903
        %v1905 = vpop.f32.mrb[0].mxu0
        %1906 = vmatprep.mubr.f32.mxu0 0.0
        %1907 = vmatmul.mubr.f32.gmra.mrb[0].mxu0 %v1584
        %v1908 = vpop.f32.mrb[0].mxu0
        %v1909 = vadd.f32 0.0, %v1908
        %v1910 = vpop.f32.mrb[0].mxu0
        %1911 = vmatprep.mubr.f32.mxu0 0.0
        %1912 = vmatmul.mubr.f32.gmra.mrb[0].mxu0 %v1586
        %v1913 = vpop.f32.mrb[0].mxu0
        %v1914 = vadd.f32 0.0, %v1913
        %v1915 = vpop.f32.mrb[0].mxu0
        %1916 = vmatprep.mubr.f32.mxu0 0.0
        %1917 = vmatmul.mubr.f32.gmra.mrb[0].mxu0 %v1588
        %v1918 = vpop.f32.mrb[0].mxu0
        %v1919 = vadd.f32 0.0, %v1918
        %v1920 = vpop.f32.mrb[0].mxu0
        %1921 = vmatprep.mubr.f32.mxu0 0.0
        %1922 = vmatmul.mubr.f32.gmra.mrb[0].mxu0 %v1590
        %v1923 = vpop.f32.mrb[0].mxu0
        %v1924 = vadd.f32 0.0, %v1923
        %v1925 = vpop.f32.mrb[0].mxu0
        %1926 = vmatprep.mubr.f32.mxu0 0.0
        %1927 = vmatmul.mubr.f32.gmra.mrb[0].mxu0 %v1592
        %v1928 = vpop.f32.mrb[0].mxu0
        %v1929 = vadd.f32 0.0, %v1928
        %v1930 = vpop.f32.mrb[0].mxu0
        %1931 = vmatprep.mubr.f32.mxu0 0.0
        %1932 = vmatmul.mubr.f32.gmra.mrb[0].mxu0 %v1594
        %v1933 = vpop.f32.mrb[0].mxu0
        %v1934 = vadd.f32 0.0, %v1933
        %v1935 = vpop.f32.mrb[0].mxu0
        %1936 = vmatprep.mubr.f32.mxu0 0.0
        %1937 = vmatmul.mubr.f32.gmra.mrb[0].mxu0 %v1596
        %v1938 = vpop.f32.mrb[0].mxu0
        %v1939 = vadd.f32 0.0, %v1938
        %v1940 = vpop.f32.mrb[0].mxu0
        %1941 = vmatprep.mubr.f32.mxu0 0.0
        %1942 = vmatmul.mubr.f32.gmra.mrb[0].mxu0 %v1598
        %v1943 = vpop.f32.mrb[0].mxu0
        %v1944 = vadd.f32 0.0, %v1943
        %v1945 = vpop.f32.mrb[0].mxu0
        %1946 = vmatprep.mubr.f32.mxu0 0.0
        %1947 = vmatmul.mubr.f32.gmra.mrb[0].mxu0 %v1600
        %v1948 = vpop.f32.mrb[0].mxu0
        %v1949 = vadd.f32 0.0, %v1948
        %v1950 = vpop.f32.mrb[0].mxu0
        %1951 = vmatprep.mubr.f32.mxu0 0.0
        %1952 = vmatmul.mubr.f32.gmra.mrb[0].mxu0 %v1602
        %v1953 = vpop.f32.mrb[0].mxu0
        %v1954 = vadd.f32 0.0, %v1953
        %v1955 = vpop.f32.mrb[0].mxu0
        %1956 = vdwg.mxu0
        %v1957 = vadd.f32 %v1796, %v1879
        %v1958 = vadd.f32 %v1797, %v1884
        %v1959 = vadd.f32 %v1798, %v1889
        %v1960 = vadd.f32 %v1799, %v1894
        %v1961 = vadd.f32 %v1800, %v1899
        %v1962 = vadd.f32 %v1801, %v1904
        %v1963 = vadd.f32 %v1802, %v1909
        %v1964 = vadd.f32 %v1803, %v1914
        %v1965 = vadd.f32 %v1804, %v1919
        %v1966 = vadd.f32 %v1805, %v1924
        %v1967 = vadd.f32 %v1806, %v1929
        %v1968 = vadd.f32 %v1807, %v1934
        %v1969 = vadd.f32 %v1808, %v1939
        %v1970 = vadd.f32 %v1809, %v1944
        %v1971 = vadd.f32 %v1810, %v1949
        %v1972 = vadd.f32 %v1811, %v1954
        %1973 = vst [vmem:[#allocation5] sm:$0xff] %v1957
        %1974 = vst [vmem:[#allocation5 + $0x8] sm:$0xff] %v1958
        %1975 = vst [vmem:[#allocation5 + $0x10] sm:$0xff] %v1959
        %1976 = vst [vmem:[#allocation5 + $0x18] sm:$0xff] %v1960
        %1977 = vst [vmem:[#allocation5 + $0x20] sm:$0xff] %v1961
        %1978 = vst [vmem:[#allocation5 + $0x28] sm:$0xff] %v1962
        %1979 = vst [vmem:[#allocation5 + $0x30] sm:$0xff] %v1963
        %1980 = vst [vmem:[#allocation5 + $0x38] sm:$0xff] %v1964
        %1981 = vst [vmem:[#allocation5 + $0x40] sm:$0xff] %v1965
        %1982 = vst [vmem:[#allocation5 + $0x48] sm:$0xff] %v1966
        %1983 = vst [vmem:[#allocation5 + $0x50] sm:$0xff] %v1967
        %1984 = vst [vmem:[#allocation5 + $0x58] sm:$0xff] %v1968
        %1985 = vst [vmem:[#allocation5 + $0x60] sm:$0xff] %v1969
        %1986 = vst [vmem:[#allocation5 + $0x68] sm:$0xff] %v1970
        %1987 = vst [vmem:[#allocation5 + $0x70] sm:$0xff] %v1971
        %1988 = vst [vmem:[#allocation5 + $0x78] sm:$0xff] %v1972
        %1989 = vst.msk [vmem:[#allocation3] sm:$0xff] %vm1683, %v1411
        %1990 = vst.msk [vmem:[#allocation3 + $0x8] sm:$0xff] %vm1683, %v1412
        %1991 = vst.msk [vmem:[#allocation3 + $0x10] sm:$0xff] %vm1683, %v1413
        %1992 = vst.msk [vmem:[#allocation3 + $0x18] sm:$0xff] %vm1683, %v1414
        %1993 = vst.msk [vmem:[#allocation3 + $0x20] sm:$0xff] %vm1683, %v1415
        %1994 = vst.msk [vmem:[#allocation3 + $0x28] sm:$0xff] %vm1683, %v1416
        %1995 = vst.msk [vmem:[#allocation3 + $0x30] sm:$0xff] %vm1683, %v1417
        %1996 = vst.msk [vmem:[#allocation3 + $0x38] sm:$0xff] %vm1683, %v1418
        %1997 = vst.msk [vmem:[#allocation3 + $0x40] sm:$0xff] %vm1683, %v1419
        %1998 = vst.msk [vmem:[#allocation3 + $0x48] sm:$0xff] %vm1683, %v1420
        %1999 = vst.msk [vmem:[#allocation3 + $0x50] sm:$0xff] %vm1683, %v1421
        %2000 = vst.msk [vmem:[#allocation3 + $0x58] sm:$0xff] %vm1683, %v1422
        %2001 = vst.msk [vmem:[#allocation3 + $0x60] sm:$0xff] %vm1683, %v1423
        %2002 = vst.msk [vmem:[#allocation3 + $0x68] sm:$0xff] %vm1683, %v1424
        %2003 = vst.msk [vmem:[#allocation3 + $0x70] sm:$0xff] %vm1683, %v1425
        %2004 = vst.msk [vmem:[#allocation3 + $0x78] sm:$0xff] %vm1683, %v1426
        %p2005 = scmp.eq.s32.totalorder %s39, 1
        // Predicated region
        $region93: #{tpu_custom_call.1} parent=59 // pred_check
          %p2006 = pneg %p2005
        $region94: #{tpu_custom_call.1} parent=59 // pred_check_branch
          %2008 = sbr.rel (%p2006) target = $region96
        $region95: #{tpu_custom_call.1} parent=59 // pred_region
          %v2009 = vld [vmem:[#allocation4] sm:$0xff]
          %v2010 = vld [vmem:[#allocation4 + $0x8] sm:$0xff]
          %v2011 = vld [vmem:[#allocation4 + $0x10] sm:$0xff]
          %v2012 = vld [vmem:[#allocation4 + $0x18] sm:$0xff]
          %v2013 = vld [vmem:[#allocation4 + $0x20] sm:$0xff]
          %v2014 = vld [vmem:[#allocation4 + $0x28] sm:$0xff]
          %v2015 = vld [vmem:[#allocation4 + $0x30] sm:$0xff]
          %v2016 = vld [vmem:[#allocation4 + $0x38] sm:$0xff]
          %v2017 = vld [vmem:[#allocation4 + $0x40] sm:$0xff]
          %v2018 = vld [vmem:[#allocation4 + $0x48] sm:$0xff]
          %v2019 = vld [vmem:[#allocation4 + $0x50] sm:$0xff]
          %v2020 = vld [vmem:[#allocation4 + $0x58] sm:$0xff]
          %v2021 = vld [vmem:[#allocation4 + $0x60] sm:$0xff]
          %v2022 = vld [vmem:[#allocation4 + $0x68] sm:$0xff]
          %v2023 = vld [vmem:[#allocation4 + $0x70] sm:$0xff]
          %v2024 = vld [vmem:[#allocation4 + $0x78] sm:$0xff]
          %v2025 = vrcp.pop %v2009
          %v2026 = vrcp.pop %v2010
          %v2027 = vrcp.pop %v2011
          %v2028 = vrcp.pop %v2012
          %v2029 = vrcp.pop %v2013
          %v2030 = vrcp.pop %v2014
          %v2031 = vrcp.pop %v2015
          %v2032 = vrcp.pop %v2016
          %v2033 = vrcp.pop %v2017
          %v2034 = vrcp.pop %v2018
          %v2035 = vrcp.pop %v2019
          %v2036 = vrcp.pop %v2020
          %v2037 = vrcp.pop %v2021
          %v2038 = vrcp.pop %v2022
          %v2039 = vrcp.pop %v2023
          %v2040 = vrcp.pop %v2024
          %v2041 = vld [vmem:[#allocation5] sm:$0xff]
          %v2042 = vld [vmem:[#allocation5 + $0x8] sm:$0xff]
          %v2043 = vld [vmem:[#allocation5 + $0x10] sm:$0xff]
          %v2044 = vld [vmem:[#allocation5 + $0x18] sm:$0xff]
          %v2045 = vld [vmem:[#allocation5 + $0x20] sm:$0xff]
          %v2046 = vld [vmem:[#allocation5 + $0x28] sm:$0xff]
          %v2047 = vld [vmem:[#allocation5 + $0x30] sm:$0xff]
          %v2048 = vld [vmem:[#allocation5 + $0x38] sm:$0xff]
          %v2049 = vld [vmem:[#allocation5 + $0x40] sm:$0xff]
          %v2050 = vld [vmem:[#allocation5 + $0x48] sm:$0xff]
          %v2051 = vld [vmem:[#allocation5 + $0x50] sm:$0xff]
          %v2052 = vld [vmem:[#allocation5 + $0x58] sm:$0xff]
          %v2053 = vld [vmem:[#allocation5 + $0x60] sm:$0xff]
          %v2054 = vld [vmem:[#allocation5 + $0x68] sm:$0xff]
          %v2055 = vld [vmem:[#allocation5 + $0x70] sm:$0xff]
          %v2056 = vld [vmem:[#allocation5 + $0x78] sm:$0xff]
          %2058 = vset.pattern.permute.xlu0 0
          %2059 = vperm.xlu0 %2058, %v2025
          %v2060 = vpop.permute.xlu0 %2059
          %2063 = vset.pattern.permute.xlu0 0
          %2064 = vperm.xlu0 %2063, %v2026
          %v2065 = vpop.permute.xlu0 %2064
          %2068 = vset.pattern.permute.xlu0 0
          %2069 = vperm.xlu0 %2068, %v2027
          %v2070 = vpop.permute.xlu0 %2069
          %2073 = vset.pattern.permute.xlu0 0
          %2074 = vperm.xlu0 %2073, %v2028
          %v2075 = vpop.permute.xlu0 %2074
          %2078 = vset.pattern.permute.xlu0 0
          %2079 = vperm.xlu0 %2078, %v2029
          %v2080 = vpop.permute.xlu0 %2079
          %2083 = vset.pattern.permute.xlu0 0
          %2084 = vperm.xlu0 %2083, %v2030
          %v2085 = vpop.permute.xlu0 %2084
          %2088 = vset.pattern.permute.xlu0 0
          %2089 = vperm.xlu0 %2088, %v2031
          %v2090 = vpop.permute.xlu0 %2089
          %2093 = vset.pattern.permute.xlu0 0
          %2094 = vperm.xlu0 %2093, %v2032
          %v2095 = vpop.permute.xlu0 %2094
          %2098 = vset.pattern.permute.xlu0 0
          %2099 = vperm.xlu0 %2098, %v2033
          %v2100 = vpop.permute.xlu0 %2099
          %2103 = vset.pattern.permute.xlu0 0
          %2104 = vperm.xlu0 %2103, %v2034
          %v2105 = vpop.permute.xlu0 %2104
          %2108 = vset.pattern.permute.xlu0 0
          %2109 = vperm.xlu0 %2108, %v2035
          %v2110 = vpop.permute.xlu0 %2109
          %2113 = vset.pattern.permute.xlu0 0
          %2114 = vperm.xlu0 %2113, %v2036
          %v2115 = vpop.permute.xlu0 %2114
          %2118 = vset.pattern.permute.xlu0 0
          %2119 = vperm.xlu0 %2118, %v2037
          %v2120 = vpop.permute.xlu0 %2119
          %2123 = vset.pattern.permute.xlu0 0
          %2124 = vperm.xlu0 %2123, %v2038
          %v2125 = vpop.permute.xlu0 %2124
          %2128 = vset.pattern.permute.xlu0 0
          %2129 = vperm.xlu0 %2128, %v2039
          %v2130 = vpop.permute.xlu0 %2129
          %2133 = vset.pattern.permute.xlu0 0
          %2134 = vperm.xlu0 %2133, %v2040
          %v2135 = vpop.permute.xlu0 %2134
          %v2137 = vmul.f32 %v2041, %v2060
          %v2138 = vmul.f32 %v2042, %v2065
          %v2139 = vmul.f32 %v2043, %v2070
          %v2140 = vmul.f32 %v2044, %v2075
          %v2141 = vmul.f32 %v2045, %v2080
          %v2142 = vmul.f32 %v2046, %v2085
          %v2143 = vmul.f32 %v2047, %v2090
          %v2144 = vmul.f32 %v2048, %v2095
          %v2145 = vmul.f32 %v2049, %v2100
          %v2146 = vmul.f32 %v2050, %v2105
          %v2147 = vmul.f32 %v2051, %v2110
          %v2148 = vmul.f32 %v2052, %v2115
          %v2149 = vmul.f32 %v2053, %v2120
          %v2150 = vmul.f32 %v2054, %v2125
          %v2151 = vmul.f32 %v2055, %v2130
          %v2152 = vmul.f32 %v2056, %v2135
          %v2153 = vld [vmem:[#allocation17] sm:$0xff]
          %v2154 = vld [vmem:[#allocation17 + $0x8] sm:$0xff]
          %v2155 = vld [vmem:[#allocation17 + $0x10] sm:$0xff]
          %v2156 = vld [vmem:[#allocation17 + $0x18] sm:$0xff]
          %v2157 = vld [vmem:[#allocation17 + $0x20] sm:$0xff]
          %v2158 = vld [vmem:[#allocation17 + $0x28] sm:$0xff]
          %v2159 = vld [vmem:[#allocation17 + $0x30] sm:$0xff]
          %v2160 = vld [vmem:[#allocation17 + $0x38] sm:$0xff]
          %v2161 = vld [vmem:[#allocation17 + $0x40] sm:$0xff]
          %v2162 = vld [vmem:[#allocation17 + $0x48] sm:$0xff]
          %v2163 = vld [vmem:[#allocation17 + $0x50] sm:$0xff]
          %v2164 = vld [vmem:[#allocation17 + $0x58] sm:$0xff]
          %v2165 = vld [vmem:[#allocation17 + $0x60] sm:$0xff]
          %v2166 = vld [vmem:[#allocation17 + $0x68] sm:$0xff]
          %v2167 = vld [vmem:[#allocation17 + $0x70] sm:$0xff]
          %v2168 = vld [vmem:[#allocation17 + $0x78] sm:$0xff]
          %v2169 = vld [vmem:[%s9] sm:$0x1]
          %v2171 = vlaneseq
          %v2172 = vshrl.u32 %v2171, 7
          %v2173 = vsub.s32 0, %v2172
          %v2174 = vrot.slane %v2169, %v2173
          %2176 = vmatprep.subr.mxu0 0.0
          %2177 = vmatpush1.msra.mxu0 %v2153
          %2178 = vmatprep.subr.mxu0 0.0
          %2179 = vmatpush1.msra.mxu0 %v2154
          %2180 = vmatprep.subr.mxu0 0.0
          %2181 = vmatpush1.msra.mxu0 %v2155
          %2182 = vmatprep.subr.mxu0 0.0
          %2183 = vmatpush1.msra.mxu0 %v2156
          %2184 = vmatprep.subr.mxu0 0.0
          %2185 = vmatpush1.msra.mxu0 %v2157
          %2186 = vmatprep.subr.mxu0 0.0
          %2187 = vmatpush1.msra.mxu0 %v2158
          %2188 = vmatprep.subr.mxu0 0.0
          %2189 = vmatpush1.msra.mxu0 %v2159
          %2190 = vmatprep.subr.mxu0 0.0
          %2191 = vmatpush1.msra.mxu0 %v2160
          %2192 = vmatprep.subr.mxu0 0.0
          %2193 = vmatpush1.msra.mxu0 %v2161
          %2194 = vmatprep.subr.mxu0 0.0
          %2195 = vmatpush1.msra.mxu0 %v2162
          %2196 = vmatprep.subr.mxu0 0.0
          %2197 = vmatpush1.msra.mxu0 %v2163
          %2198 = vmatprep.subr.mxu0 0.0
          %2199 = vmatpush1.msra.mxu0 %v2164
          %2200 = vmatprep.subr.mxu0 0.0
          %2201 = vmatpush1.msra.mxu0 %v2165
          %2202 = vmatprep.subr.mxu0 0.0
          %2203 = vmatpush1.msra.mxu0 %v2166
          %2204 = vmatprep.subr.mxu0 0.0
          %2205 = vmatpush1.msra.mxu0 %v2167
          %2206 = vmatprep.subr.mxu0 0.0
          %2207 = vmatpush1.msra.mxu0 %v2168
          %2208 = vmatprep.subr.mxu0 0.0
          %2209 = vmatpush1.msra.mxu0 0.0
          %2210 = vmatprep.subr.mxu0 0.0
          %2211 = vmatpush1.msra.mxu0 0.0
          %2212 = vmatprep.subr.mxu0 0.0
          %2213 = vmatpush1.msra.mxu0 0.0
          %2214 = vmatprep.subr.mxu0 0.0
          %2215 = vmatpush1.msra.mxu0 0.0
          %2216 = vmatprep.subr.mxu0 0.0
          %2217 = vmatpush1.msra.mxu0 0.0
          %2218 = vmatprep.subr.mxu0 0.0
          %2219 = vmatpush1.msra.mxu0 0.0
          %2220 = vmatprep.subr.mxu0 0.0
          %2221 = vmatpush1.msra.mxu0 0.0
          %2222 = vmatprep.subr.mxu0 0.0
          %2223 = vmatpush1.msra.mxu0 0.0
          %2224 = vmatprep.subr.mxu0 0.0
          %2225 = vmatpush1.msra.mxu0 0.0
          %2226 = vmatprep.subr.mxu0 0.0
          %2227 = vmatpush1.msra.mxu0 0.0
          %2228 = vmatprep.subr.mxu0 0.0
          %2229 = vmatpush1.msra.mxu0 0.0
          %2230 = vmatprep.subr.mxu0 0.0
          %2231 = vmatpush1.msra.mxu0 0.0
          %2232 = vmatprep.subr.mxu0 0.0
          %2233 = vmatpush1.msra.mxu0 0.0
          %2234 = vmatprep.subr.mxu0 0.0
          %2235 = vmatpush1.msra.mxu0 0.0
          %2236 = vmatprep.subr.mxu0 0.0
          %2237 = vmatpush1.msra.mxu0 0.0
          %2238 = vmatprep.subr.mxu0 0.0
          %2239 = vmatpush1.msra.mxu0 0.0
          %2240 = vmatprep.mubr.f32.mxu0 0.0
          %2241 = vmatmul.mubr.f32.gmra.mrb[0].mxu0 %v2137
          %v2242 = vpop.f32.mrb[0].mxu0
          %v2243 = vadd.f32 %v2174, %v2242
          %v2244 = vpop.f32.mrb[0].mxu0
          %2245 = vmatprep.mubr.f32.mxu0 0.0
          %2246 = vmatmul.mubr.f32.gmra.mrb[0].mxu0 %v2138
          %v2247 = vpop.f32.mrb[0].mxu0
          %v2248 = vadd.f32 %v2174, %v2247
          %v2249 = vpop.f32.mrb[0].mxu0
          %2250 = vmatprep.mubr.f32.mxu0 0.0
          %2251 = vmatmul.mubr.f32.gmra.mrb[0].mxu0 %v2139
          %v2252 = vpop.f32.mrb[0].mxu0
          %v2253 = vadd.f32 %v2174, %v2252
          %v2254 = vpop.f32.mrb[0].mxu0
          %2255 = vmatprep.mubr.f32.mxu0 0.0
          %2256 = vmatmul.mubr.f32.gmra.mrb[0].mxu0 %v2140
          %v2257 = vpop.f32.mrb[0].mxu0
          %v2258 = vadd.f32 %v2174, %v2257
          %v2259 = vpop.f32.mrb[0].mxu0
          %2260 = vmatprep.mubr.f32.mxu0 0.0
          %2261 = vmatmul.mubr.f32.gmra.mrb[0].mxu0 %v2141
          %v2262 = vpop.f32.mrb[0].mxu0
          %v2263 = vadd.f32 %v2174, %v2262
          %v2264 = vpop.f32.mrb[0].mxu0
          %2265 = vmatprep.mubr.f32.mxu0 0.0
          %2266 = vmatmul.mubr.f32.gmra.mrb[0].mxu0 %v2142
          %v2267 = vpop.f32.mrb[0].mxu0
          %v2268 = vadd.f32 %v2174, %v2267
          %v2269 = vpop.f32.mrb[0].mxu0
          %2270 = vmatprep.mubr.f32.mxu0 0.0
          %2271 = vmatmul.mubr.f32.gmra.mrb[0].mxu0 %v2143
          %v2272 = vpop.f32.mrb[0].mxu0
          %v2273 = vadd.f32 %v2174, %v2272
          %v2274 = vpop.f32.mrb[0].mxu0
          %2275 = vmatprep.mubr.f32.mxu0 0.0
          %2276 = vmatmul.mubr.f32.gmra.mrb[0].mxu0 %v2144
          %v2277 = vpop.f32.mrb[0].mxu0
          %v2278 = vadd.f32 %v2174, %v2277
          %v2279 = vpop.f32.mrb[0].mxu0
          %2280 = vmatprep.mubr.f32.mxu0 0.0
          %2281 = vmatmul.mubr.f32.gmra.mrb[0].mxu0 %v2145
          %v2282 = vpop.f32.mrb[0].mxu0
          %v2283 = vadd.f32 %v2174, %v2282
          %v2284 = vpop.f32.mrb[0].mxu0
          %2285 = vmatprep.mubr.f32.mxu0 0.0
          %2286 = vmatmul.mubr.f32.gmra.mrb[0].mxu0 %v2146
          %v2287 = vpop.f32.mrb[0].mxu0
          %v2288 = vadd.f32 %v2174, %v2287
          %v2289 = vpop.f32.mrb[0].mxu0
          %2290 = vmatprep.mubr.f32.mxu0 0.0
          %2291 = vmatmul.mubr.f32.gmra.mrb[0].mxu0 %v2147
          %v2292 = vpop.f32.mrb[0].mxu0
          %v2293 = vadd.f32 %v2174, %v2292
          %v2294 = vpop.f32.mrb[0].mxu0
          %2295 = vmatprep.mubr.f32.mxu0 0.0
          %2296 = vmatmul.mubr.f32.gmra.mrb[0].mxu0 %v2148
          %v2297 = vpop.f32.mrb[0].mxu0
          %v2298 = vadd.f32 %v2174, %v2297
          %v2299 = vpop.f32.mrb[0].mxu0
          %2300 = vmatprep.mubr.f32.mxu0 0.0
          %2301 = vmatmul.mubr.f32.gmra.mrb[0].mxu0 %v2149
          %v2302 = vpop.f32.mrb[0].mxu0
          %v2303 = vadd.f32 %v2174, %v2302
          %v2304 = vpop.f32.mrb[0].mxu0
          %2305 = vmatprep.mubr.f32.mxu0 0.0
          %2306 = vmatmul.mubr.f32.gmra.mrb[0].mxu0 %v2150
          %v2307 = vpop.f32.mrb[0].mxu0
          %v2308 = vadd.f32 %v2174, %v2307
          %v2309 = vpop.f32.mrb[0].mxu0
          %2310 = vmatprep.mubr.f32.mxu0 0.0
          %2311 = vmatmul.mubr.f32.gmra.mrb[0].mxu0 %v2151
          %v2312 = vpop.f32.mrb[0].mxu0
          %v2313 = vadd.f32 %v2174, %v2312
          %v2314 = vpop.f32.mrb[0].mxu0
          %2315 = vmatprep.mubr.f32.mxu0 0.0
          %2316 = vmatmul.mubr.f32.gmra.mrb[0].mxu0 %v2152
          %v2317 = vpop.f32.mrb[0].mxu0
          %v2318 = vadd.f32 %v2174, %v2317
          %v2319 = vpop.f32.mrb[0].mxu0
          %2320 = vdwg.mxu0
          %2321 = vst [vmem:[%s504] sm:$0xff] %v2243
          %2322 = vst [vmem:[%s504 + $0x8] sm:$0xff] %v2248
          %2323 = vst [vmem:[%s504 + $0x10] sm:$0xff] %v2253
          %2324 = vst [vmem:[%s504 + $0x18] sm:$0xff] %v2258
          %2325 = vst [vmem:[%s504 + $0x20] sm:$0xff] %v2263
          %2326 = vst [vmem:[%s504 + $0x28] sm:$0xff] %v2268
          %2327 = vst [vmem:[%s504 + $0x30] sm:$0xff] %v2273
          %2328 = vst [vmem:[%s504 + $0x38] sm:$0xff] %v2278
          %2329 = vst [vmem:[%s504 + $0x40] sm:$0xff] %v2283
          %2330 = vst [vmem:[%s504 + $0x48] sm:$0xff] %v2288
          %2331 = vst [vmem:[%s504 + $0x50] sm:$0xff] %v2293
          %2332 = vst [vmem:[%s504 + $0x58] sm:$0xff] %v2298
          %2333 = vst [vmem:[%s504 + $0x60] sm:$0xff] %v2303
          %2334 = vst [vmem:[%s504 + $0x68] sm:$0xff] %v2308
          %2335 = vst [vmem:[%s504 + $0x70] sm:$0xff] %v2313
          %2336 = vst [vmem:[%s504 + $0x78] sm:$0xff] %v2318
        $region96: #{tpu_custom_call.1} parent=59 // pred_fallthru
          _
        %s2337 = sand.u32 %s285, 1
        %s2338 = scalar_lea.sflag [#allocation10], %s2337
        %s2339 = sand.u32 %s285, 1
        %s2340 = smul.addr %s2339, 128
        %s2341 = scalar_lea.vmem [#allocation19], %s2340
        // Predicated region
        $region97: #{tpu_custom_call.1} parent=59 // pred_check
          %p2342 = pneg %p295
        $region98: #{tpu_custom_call.1} parent=59 // pred_check_branch
          %2344 = sbr.rel (%p2342) target = $region100
        $region99: #{tpu_custom_call.1} parent=59 // pred_region
          %s2345 = smul.u32 16, %s38
          %s2347 = ssub.s32 2048, 2048
          %2348 = vsyncadd %s2338, %s2347
          %s2349 = smul.addr %s37, 32
          %s2350 = sadd.s32 %s2345, %s2349
          %s2351 = smul.addr %s2350, 128
          %s2352 = scalar_lea.hbm %s10, %s2351
          %s2353 = sshll.u32 %s2341, 4
          %s2354 = int_to_ptr.vmem [resolvable:$true] %s2353
          %2359 = dma.vmem_to_hbm [thread:$0]  %s2354, 2048, %s2352, %s2338, 128, 128, 8
        $region100: #{tpu_custom_call.1} parent=59 // pred_fallthru
          _
      $region60: #{tpu_custom_call.1} parent=5 // pred_fallthru
        _
      %p2360 = scmp.le.s32.totalorder 2, %s27
      // Predicated region
      $region101: #{tpu_custom_call.1} parent=5 // pred_check
        %p2361 = pneg %p2360
      $region102: #{tpu_custom_call.1} parent=5 // pred_check_branch
        %2363 = sbr.rel (%p2361) target = $region104
      $region103: #{tpu_custom_call.1} parent=5 // pred_region
        %s2364 = ssub.s32 %s27, 2
        // Predicated region
        $region105: #{tpu_custom_call.1} parent=103 // pred_check
          %p2365 = pneg %p301
        $region106: #{tpu_custom_call.1} parent=103 // pred_check_branch
          %2367 = sbr.rel (%p2365) target = $region108
        $region107: #{tpu_custom_call.1} parent=103 // pred_region
          %s2368 = sand.u32 %s286, 1
          %s2369 = scalar_lea.sflag [#allocation10], %s2368
          %s2370 = sand.u32 %s286, 1
          %s2371 = smul.addr %s2370, 128
          %s2372 = scalar_lea.vmem [#allocation19], %s2371
          %2373 = dma.done %s2369, 2048
        $region108: #{tpu_custom_call.1} parent=103 // pred_fallthru
          _
      $region104: #{tpu_custom_call.1} parent=5 // pred_fallthru
        _
    $region6: #{tpu_custom_call.1} parent=1 // loop_footer
      %s31 = sadd.s32 1, %s27
    $region7: #{tpu_custom_call.1} parent=1 // loop_footer_branch
      %26 = sbr.rel target = $region3
    $region8: #{tpu_custom_call.1} parent=1 // loop_exit
      _
    %2374 = vsyncpa [#allocation9], 1
    %s2375 = scalar_lea.sflag [#allocation9], 1
    %2376 = vsyncpa %s2375, 1
    %2377 = vsyncpa [#allocation12], 1
    %s2378 = scalar_lea.sflag [#allocation12], 1
    %2379 = vsyncpa %s2378, 1
    %2380 = vsyncpa [#allocation15], 1
    %2381 = vsyncpa [#allocation18], 1
    %2382 = vsyncpa [#allocation10], 1
    %s2383 = scalar_lea.sflag [#allocation10], 1
    %2384 = vsyncpa %s2383, 1

</llo_original>
